<compile_context>
chip_gen: v6e
topology: v6e:2x2x1
jax: 0.10.0
libtpu: 0.0.40
codegen_flags: <defaults>
</compile_context>

<pallas_src>
import jax
import jax.numpy as jnp
from jax.experimental import pallas as pl
from jax.experimental.pallas import tpu as pltpu


# ----------------------------- Pallas kernel -------------------------------

def hgcn_fused_kernel(a_ref, xw_ref, b_ref, w1_ref, b1_ref, w2_ref, o_ref,
                      z_acc, num_acc, m_run, d_run):
    # a_ref  : (1, tile, tile) bf16   adjacency block of meta-path m
    # xw_ref : (1, tile, Fp)   bf16   pre-projected features X @ W[m]
    # b_ref  : (1, 1, Fp)      f32    GCN bias of meta-path m
    # w1_ref : (Fp, H) f32, b1_ref: (1, H) f32, w2_ref: (1, H) f32 (attention)
    # o_ref  : (tile, Fp) f32         fused output for this row tile
    m = pl.program_id(1)
    k = pl.program_id(2)
    num_m = pl.num_programs(1)
    num_k = pl.num_programs(2)

    # Reset the online-softmax state once per row tile.
    @pl.when(jnp.logical_and(m == 0, k == 0))
    def _():
        m_run[...] = jnp.full_like(m_run, -jnp.inf)
        d_run[...] = jnp.zeros_like(d_run)
        num_acc[...] = jnp.zeros_like(num_acc)

    # Reset the GCN accumulator once per meta-path.
    @pl.when(k == 0)
    def _():
        z_acc[...] = jnp.zeros_like(z_acc)

    # bf16 x bf16 MXU matmul with f32 accumulation.
    z_acc[...] += jnp.dot(a_ref[0], xw_ref[0],
                          preferred_element_type=jnp.float32)

    # On the last K block of this meta-path: finish Z, compute its semantic
    # attention score, and fold it into the online softmax over meta-paths.
    @pl.when(k == num_k - 1)
    def _():
        z = z_acc[...] + b_ref[0]                                  # (tile, Fp)
        hproj = jnp.tanh(
            jnp.dot(z, w1_ref[...], preferred_element_type=jnp.float32)
            + b1_ref[...])                                         # (tile, H)
        # Linear(hidden -> 1, no bias) as a lane reduction (avoids width-1 MXU).
        s = jnp.sum(hproj * w2_ref[...], axis=-1, keepdims=True)   # (tile, 1)

        m_new = jnp.maximum(m_run[...], s)
        alpha = jnp.exp(m_run[...] - m_new)
        p = jnp.exp(s - m_new)
        d_run[...] = d_run[...] * alpha + p
        num_acc[...] = num_acc[...] * alpha + p * z
        m_run[...] = m_new

    # Final meta-path: normalize and store the lane-dense output block.
    @pl.when(jnp.logical_and(m == num_m - 1, k == num_k - 1))
    def _():
        o_ref[...] = num_acc[...] * pl.reciprocal(d_run[...], approx=True)


# ------------------------------ JAX wrappers --------------------------------

def _round_up(x, m):
    return (x + m - 1) // m * m


def gcn_norm_dense(adj):
    """D^{-1/2} (A + I) D^{-1/2} for a dense (possibly weighted) adjacency."""
    n = adj.shape[-1]
    a_hat = adj + jnp.eye(n, dtype=adj.dtype)
    deg = a_hat.sum(axis=-1)
    d_inv_sqrt = jnp.where(deg > 0, 1.0 / jnp.sqrt(deg), 0.0)
    return a_hat * d_inv_sqrt[:, None] * d_inv_sqrt[None, :]


def hgcn_layer_forward(h, adjs, gcn_w, gcn_b, att_w1, att_b1, att_w2,
                       *, tile=512, vmem_limit_bytes=48 * 1024 * 1024):
    """Fused HGCNLayer forward: (N, F_in), (M, N, N) -> (N, F_out)."""
    M, N, _ = adjs.shape
    F_in = h.shape[1]
    F_out = gcn_w.shape[-1]
    H = att_w1.shape[1]
    LANE = 128

    # Tile sizes: multiples of 128 (bf16 sublane/lane safe), capped by N.
    # NOTE: on v7x (64 MiB VMEM) prefer tile<=512; on v5e/v6e up to 1024 fits.
    tile = _round_up(min(tile, _round_up(N, LANE)), LANE)
    Np = _round_up(N, tile)
    Fp = _round_up(F_out, LANE)          # lane-dense output/accumulator width

    # --- glue (plain XLA): normalization in f32, padding, bf16 casts ---
    a_norm = jax.vmap(gcn_norm_dense)(adjs.astype(jnp.float32))
    a_pad = jnp.zeros((M, Np, Np), jnp.float32).at[:, :N, :N].set(a_norm)
    a_bf16 = a_pad.astype(jnp.bfloat16)

    w_pad = jnp.zeros((M, F_in, Fp), jnp.float32).at[:, :, :F_out].set(gcn_w)
    x_pad = jnp.zeros((Np, F_in), jnp.float32).at[:N].set(h.astype(jnp.float32))
    # Hoisted projection X @ W[m]  (F_in is tiny; cheap in XLA, done once).
    xw_bf16 = jnp.einsum('nf,mfo->mno', x_pad, w_pad).astype(jnp.bfloat16)

    b_pad = jnp.zeros((M, 1, Fp), jnp.float32).at[:, 0, :F_out].set(gcn_b)
    w1_pad = jnp.zeros((Fp, H), jnp.float32).at[:F_out].set(att_w1)
    b1_2d = att_b1.reshape(1, H).astype(jnp.float32)
    w2_row = att_w2.reshape(1, H).astype(jnp.float32)

    grid = (Np // tile, M, Np // tile)

    cost = pl.CostEstimate(
        flops=int(2 * M * Np * Np * Fp + 2 * M * Np * Fp * H),
        transcendentals=int(M * Np * (H + 2)),
        bytes_accessed=int(M * Np * Np * 2 + M * Np * Fp * 2 + Np * Fp * 4
                           + M * Fp * 4 + Fp * H * 4 + 2 * H * 4))

    out_pad = pl.pallas_call(
        hgcn_fused_kernel,
        out_shape=jax.ShapeDtypeStruct((Np, Fp), jnp.float32),
        grid_spec=pltpu.PrefetchScalarGridSpec(
            num_scalar_prefetch=0,
            grid=grid,
            in_specs=[
                pl.BlockSpec((1, tile, tile), lambda i, m, k: (m, i, k)),  # A
                pl.BlockSpec((1, tile, Fp), lambda i, m, k: (m, k, 0)),    # XW
                pl.BlockSpec((1, 1, Fp), lambda i, m, k: (m, 0, 0)),       # b
                pl.BlockSpec((Fp, H), lambda i, m, k: (0, 0)),             # att W1
                pl.BlockSpec((1, H), lambda i, m, k: (0, 0)),              # att b1
                pl.BlockSpec((1, H), lambda i, m, k: (0, 0)),              # att w2
            ],
            out_specs=pl.BlockSpec((tile, Fp), lambda i, m, k: (i, 0)),
            scratch_shapes=[
                pltpu.VMEM((tile, Fp), jnp.float32),   # Z accumulator
                pltpu.VMEM((tile, Fp), jnp.float32),   # softmax numerator
                pltpu.VMEM((tile, 1), jnp.float32),    # running max
                pltpu.VMEM((tile, 1), jnp.float32),    # running denominator
            ]),
        compiler_params=pltpu.CompilerParams(
            dimension_semantics=("parallel", "arbitrary", "arbitrary"),
            vmem_limit_bytes=vmem_limit_bytes),
        cost_estimate=cost,
    )(a_bf16, xw_bf16, b_pad, w1_pad, b1_2d, w2_row)

    return out_pad[:N, :F_out]


# ------------------------------- reference ----------------------------------

def reference_forward(h, adjs, gcn_w, gcn_b, att_w1, att_b1, att_w2):
    embs = []
    for m in range(adjs.shape[0]):
        a = gcn_norm_dense(adjs[m])
        embs.append(a @ h @ gcn_w[m] + gcn_b[m])
    z = jnp.stack(embs, axis=1)                             # (N, M, F_out)
    proj = jnp.tanh(z @ att_w1 + att_b1) @ att_w2           # (N, M, 1)
    beta = jax.nn.softmax(proj, axis=1)
    return (beta * z).sum(axis=1)                           # (N, F_out)


# --------------------------------- main --------------------------------------

if __name__ == "__main__":
    N = 200           # nodes (not a multiple of 128 -> exercises padding)
    M = 3             # num_meta_paths
    IN_SIZE = 16
    OUT_SIZE = 32
    HIDDEN = 128      # SemanticAttention default hidden size

    key = jax.random.PRNGKey(0)
    k_h, k_adj, k_w, k_b, k_w1, k_b1, k_w2 = jax.random.split(key, 7)

    # Node features
    h = jax.random.normal(k_h, (N, IN_SIZE), dtype=jnp.float32)

    # Dense symmetric adjacencies per meta-path (no self loops).
    raw = jax.random.uniform(k_adj, (M, N, N), dtype=jnp.float32)
    mask = (raw > 0.6).astype(jnp.float32)
    adjs = jnp.triu(mask, 1)
    adjs = adjs + jnp.swapaxes(adjs, -1, -2)

    # Deterministic parameter init (glorot-ish scaling)
    gcn_w = jax.random.normal(k_w, (M, IN_SIZE, OUT_SIZE), jnp.float32) * (
        (2.0 / (IN_SIZE + OUT_SIZE)) ** 0.5)
    gcn_b = jax.random.normal(k_b, (M, OUT_SIZE), jnp.float32) * 0.01
    att_w1 = jax.random.normal(k_w1, (OUT_SIZE, HIDDEN), jnp.float32) * (
        (2.0 / (OUT_SIZE + HIDDEN)) ** 0.5)
    att_b1 = jax.random.normal(k_b1, (HIDDEN,), jnp.float32) * 0.01
    att_w2 = jax.random.normal(k_w2, (HIDDEN, 1), jnp.float32) * (
        (2.0 / (HIDDEN + 1)) ** 0.5)

    # tile=128 at these small shapes -> grid (2, 3, 2): exercises row/K tiling,
    # the online softmax over meta-paths, and the lane-padding paths.
    out = hgcn_layer_forward(h, adjs, gcn_w, gcn_b, att_w1, att_b1, att_w2,
                             tile=128)
    out = jax.block_until_ready(out)

    ref = reference_forward(h, adjs, gcn_w, gcn_b, att_w1, att_b1, att_w2)
    assert out.shape == (N, OUT_SIZE)
    # bf16 MXU operands (f32 accumulation) -> loosen tolerance vs f32 reference.
    assert jnp.allclose(out, ref, atol=2e-2, rtol=2e-2), "mismatch vs reference"

    print("KERNEL_OK")
</pallas_src>

<mosaic_0001>
module attributes {stable_mosaic.version = 11 : i64} {
  func.func @hgcn_fused_kernel(%arg0: i32, %arg1: i32, %arg2: i32, %arg3: memref<1x128x128xbf16, #tpu.memory_space<vmem>>, %arg4: memref<1x128x128xbf16, #tpu.memory_space<vmem>>, %arg5: memref<1x1x128xf32, #tpu.memory_space<vmem>>, %arg6: memref<128x128xf32, #tpu.memory_space<vmem>>, %arg7: memref<1x128xf32, #tpu.memory_space<vmem>>, %arg8: memref<1x128xf32, #tpu.memory_space<vmem>>, %arg9: memref<128x128xf32, #tpu.memory_space<vmem>>, %arg10: memref<128x128xf32, #tpu.memory_space<vmem>>, %arg11: memref<128x128xf32, #tpu.memory_space<vmem>>, %arg12: memref<128x1xf32, #tpu.memory_space<vmem>>, %arg13: memref<128x1xf32, #tpu.memory_space<vmem>>) attributes {dimension_semantics = [#tpu.dimension_semantics<parallel>, #tpu.dimension_semantics<arbitrary>, #tpu.dimension_semantics<arbitrary>], iteration_bounds = array<i64: 2, 3, 2>, scalar_prefetch = 0 : i64, scratch_operands = 4 : i64, tpu.core_type = #tpu.core_type<tc>, window_params = [{transform_indices = @transform_0, window_bounds = array<i64: 1, 128, 128>}, {transform_indices = @transform_1, window_bounds = array<i64: 1, 128, 128>}, {transform_indices = @transform_2, window_bounds = array<i64: 1, 1, 128>}, {pipeline_mode = #tpu.pipeline_mode<synchronous>, transform_indices = @transform_3, window_bounds = array<i64: 128, 128>}, {pipeline_mode = #tpu.pipeline_mode<synchronous>, transform_indices = @transform_4, window_bounds = array<i64: 1, 128>}, {pipeline_mode = #tpu.pipeline_mode<synchronous>, transform_indices = @transform_5, window_bounds = array<i64: 1, 128>}, {transform_indices = @transform_6, window_bounds = array<i64: 128, 128>}]} {
    %c0_i32 = arith.constant 0 : i32
    %0 = arith.cmpi eq, %arg1, %c0_i32 : i32
    %c0_i32_0 = arith.constant 0 : i32
    %1 = arith.cmpi eq, %arg2, %c0_i32_0 : i32
    %2 = arith.andi %0, %1 : i1
    %3 = arith.extui %2 : i1 to i32
    %c0_i32_1 = arith.constant 0 : i32
    %4 = arith.cmpi ne, %3, %c0_i32_1 : i32
    scf.if %4 {
      %cst_16 = arith.constant 0xFF800000 : f32
      %24 = vector.broadcast %cst_16 : f32 to vector<128x1xf32>
      %c0_17 = arith.constant 0 : index
      %c0_18 = arith.constant 0 : index
      %25 = vector.load %arg12[%c0_17, %c0_18] : memref<128x1xf32, #tpu.memory_space<vmem>>, vector<128x1xf32>
      tpu.vector_store %arg12[%c0_17, %c0_18], %24 {strides = array<i32>} : memref<128x1xf32, #tpu.memory_space<vmem>>, vector<128x1xf32>,
      %cst_19 = arith.constant 0.000000e+00 : f32
      %26 = vector.broadcast %cst_19 : f32 to vector<128x1xf32>
      %c0_20 = arith.constant 0 : index
      %c0_21 = arith.constant 0 : index
      %27 = vector.load %arg13[%c0_20, %c0_21] : memref<128x1xf32, #tpu.memory_space<vmem>>, vector<128x1xf32>
      tpu.vector_store %arg13[%c0_20, %c0_21], %26 {strides = array<i32>} : memref<128x1xf32, #tpu.memory_space<vmem>>, vector<128x1xf32>,
      %cst_22 = arith.constant 0.000000e+00 : f32
      %28 = vector.broadcast %cst_22 : f32 to vector<128x128xf32>
      %c0_23 = arith.constant 0 : index
      %c0_24 = arith.constant 0 : index
      %29 = vector.load %arg11[%c0_23, %c0_24] : memref<128x128xf32, #tpu.memory_space<vmem>>, vector<128x128xf32>
      tpu.vector_store %arg11[%c0_23, %c0_24], %28 {strides = array<i32>} : memref<128x128xf32, #tpu.memory_space<vmem>>, vector<128x128xf32>,
    } else {
    }
    %c0_i32_2 = arith.constant 0 : i32
    %5 = arith.cmpi eq, %arg2, %c0_i32_2 : i32
    %6 = arith.extui %5 : i1 to i32
    %c0_i32_3 = arith.constant 0 : i32
    %7 = arith.cmpi ne, %6, %c0_i32_3 : i32
    scf.if %7 {
      %cst_16 = arith.constant 0.000000e+00 : f32
      %24 = vector.broadcast %cst_16 : f32 to vector<128x128xf32>
      %c0_17 = arith.constant 0 : index
      %c0_18 = arith.constant 0 : index
      %25 = vector.load %arg10[%c0_17, %c0_18] : memref<128x128xf32, #tpu.memory_space<vmem>>, vector<128x128xf32>
      tpu.vector_store %arg10[%c0_17, %c0_18], %24 {strides = array<i32>} : memref<128x128xf32, #tpu.memory_space<vmem>>, vector<128x128xf32>,
    } else {
    }
    %c0 = arith.constant 0 : index
    %c0_4 = arith.constant 0 : index
    %8 = vector.load %arg10[%c0, %c0_4] : memref<128x128xf32, #tpu.memory_space<vmem>>, vector<128x128xf32>
    %c0_5 = arith.constant 0 : index
    %c0_6 = arith.constant 0 : index
    %c0_7 = arith.constant 0 : index
    %9 = vector.load %arg3[%c0_5, %c0_6, %c0_7] : memref<1x128x128xbf16, #tpu.memory_space<vmem>>, vector<1x128x128xbf16>
    %10 = vector.shape_cast %9 : vector<1x128x128xbf16> to vector<128x128xbf16>
    %c0_8 = arith.constant 0 : index
    %c0_9 = arith.constant 0 : index
    %c0_10 = arith.constant 0 : index
    %11 = vector.load %arg4[%c0_8, %c0_9, %c0_10] : memref<1x128x128xbf16, #tpu.memory_space<vmem>>, vector<1x128x128xbf16>
    %12 = vector.shape_cast %11 : vector<1x128x128xbf16> to vector<128x128xbf16>
    %cst = arith.constant dense<0.000000e+00> : vector<128x128xf32>
    %13 = tpu.matmul %10, %12, %cst {dimension_numbers = #tpu.dot_dimension_numbers<[1], [0], [0], [1], [0, 0, 1, 1], [], []>} : vector<128x128xbf16>, vector<128x128xbf16>, vector<128x128xf32> -> vector<128x128xf32>
    %14 = arith.addf %8, %13 : vector<128x128xf32>
    %c0_11 = arith.constant 0 : index
    %c0_12 = arith.constant 0 : index
    %15 = vector.load %arg10[%c0_11, %c0_12] : memref<128x128xf32, #tpu.memory_space<vmem>>, vector<128x128xf32>
    tpu.vector_store %arg10[%c0_11, %c0_12], %14 {strides = array<i32>} : memref<128x128xf32, #tpu.memory_space<vmem>>, vector<128x128xf32>,
    %c1_i32 = arith.constant 1 : i32
    %16 = arith.cmpi eq, %arg2, %c1_i32 : i32
    %17 = arith.extui %16 : i1 to i32
    %c0_i32_13 = arith.constant 0 : i32
    %18 = arith.cmpi ne, %17, %c0_i32_13 : i32
    scf.if %18 {
      %c0_16 = arith.constant 0 : index
      %c0_17 = arith.constant 0 : index
      %24 = vector.load %arg10[%c0_16, %c0_17] : memref<128x128xf32, #tpu.memory_space<vmem>>, vector<128x128xf32>
      %c0_18 = arith.constant 0 : index
      %c0_19 = arith.constant 0 : index
      %c0_20 = arith.constant 0 : index
      %25 = vector.load %arg5[%c0_18, %c0_19, %c0_20] : memref<1x1x128xf32, #tpu.memory_space<vmem>>, vector<1x1x128xf32>
      %26 = vector.shape_cast %25 : vector<1x1x128xf32> to vector<1x128xf32>
      %27 = vector.broadcast %26 : vector<1x128xf32> to vector<128x128xf32>
      %28 = arith.addf %24, %27 : vector<128x128xf32>
      %c0_21 = arith.constant 0 : index
      %c0_22 = arith.constant 0 : index
      %29 = vector.load %arg6[%c0_21, %c0_22] : memref<128x128xf32, #tpu.memory_space<vmem>>, vector<128x128xf32>
      %cst_23 = arith.constant dense<0.000000e+00> : vector<128x128xf32>
      %30 = tpu.matmul %28, %29, %cst_23 {dimension_numbers = #tpu.dot_dimension_numbers<[1], [0], [0], [1], [0, 0, 1, 1], [], []>} : vector<128x128xf32>, vector<128x128xf32>, vector<128x128xf32> -> vector<128x128xf32>
      %c0_24 = arith.constant 0 : index
      %c0_25 = arith.constant 0 : index
      %31 = vector.load %arg7[%c0_24, %c0_25] : memref<1x128xf32, #tpu.memory_space<vmem>>, vector<1x128xf32>
      %32 = vector.broadcast %31 : vector<1x128xf32> to vector<128x128xf32>
      %33 = arith.addf %30, %32 : vector<128x128xf32>
      %34 = math.tanh %33 : vector<128x128xf32>
      %c0_26 = arith.constant 0 : index
      %c0_27 = arith.constant 0 : index
      %35 = vector.load %arg8[%c0_26, %c0_27] : memref<1x128xf32, #tpu.memory_space<vmem>>, vector<1x128xf32>
      %36 = vector.broadcast %35 : vector<1x128xf32> to vector<128x128xf32>
      %37 = arith.mulf %34, %36 : vector<128x128xf32>
      %cst_28 = arith.constant dense<0.000000e+00> : vector<128xf32>
      %38 = vector.multi_reduction <add>, %37, %cst_28 [1] : vector<128x128xf32> to vector<128xf32>
      %39 = vector.shape_cast %38 : vector<128xf32> to vector<128x1xf32>
      %c0_29 = arith.constant 0 : index
      %c0_30 = arith.constant 0 : index
      %40 = vector.load %arg12[%c0_29, %c0_30] : memref<128x1xf32, #tpu.memory_space<vmem>>, vector<128x1xf32>
      %41 = arith.maximumf %40, %39 : vector<128x1xf32>
      %c0_31 = arith.constant 0 : index
      %c0_32 = arith.constant 0 : index
      %42 = vector.load %arg12[%c0_31, %c0_32] : memref<128x1xf32, #tpu.memory_space<vmem>>, vector<128x1xf32>
      %43 = arith.subf %42, %41 : vector<128x1xf32>
      %44 = math.exp %43 : vector<128x1xf32>
      %45 = arith.subf %39, %41 : vector<128x1xf32>
      %46 = math.exp %45 : vector<128x1xf32>
      %c0_33 = arith.constant 0 : index
      %c0_34 = arith.constant 0 : index
      %47 = vector.load %arg13[%c0_33, %c0_34] : memref<128x1xf32, #tpu.memory_space<vmem>>, vector<128x1xf32>
      %48 = arith.mulf %47, %44 : vector<128x1xf32>
      %49 = arith.addf %48, %46 : vector<128x1xf32>
      %c0_35 = arith.constant 0 : index
      %c0_36 = arith.constant 0 : index
      %50 = vector.load %arg13[%c0_35, %c0_36] : memref<128x1xf32, #tpu.memory_space<vmem>>, vector<128x1xf32>
      tpu.vector_store %arg13[%c0_35, %c0_36], %49 {strides = array<i32>} : memref<128x1xf32, #tpu.memory_space<vmem>>, vector<128x1xf32>,
      %c0_37 = arith.constant 0 : index
      %c0_38 = arith.constant 0 : index
      %51 = vector.load %arg11[%c0_37, %c0_38] : memref<128x128xf32, #tpu.memory_space<vmem>>, vector<128x128xf32>
      %52 = vector.broadcast %44 : vector<128x1xf32> to vector<128x128xf32>
      %53 = arith.mulf %51, %52 : vector<128x128xf32>
      %54 = vector.broadcast %46 : vector<128x1xf32> to vector<128x128xf32>
      %55 = arith.mulf %54, %28 : vector<128x128xf32>
      %56 = arith.addf %53, %55 : vector<128x128xf32>
      %c0_39 = arith.constant 0 : index
      %c0_40 = arith.constant 0 : index
      %57 = vector.load %arg11[%c0_39, %c0_40] : memref<128x128xf32, #tpu.memory_space<vmem>>, vector<128x128xf32>
      tpu.vector_store %arg11[%c0_39, %c0_40], %56 {strides = array<i32>} : memref<128x128xf32, #tpu.memory_space<vmem>>, vector<128x128xf32>,
      %c0_41 = arith.constant 0 : index
      %c0_42 = arith.constant 0 : index
      %58 = vector.load %arg12[%c0_41, %c0_42] : memref<128x1xf32, #tpu.memory_space<vmem>>, vector<128x1xf32>
      tpu.vector_store %arg12[%c0_41, %c0_42], %41 {strides = array<i32>} : memref<128x1xf32, #tpu.memory_space<vmem>>, vector<128x1xf32>,
    } else {
    }
    %c2_i32 = arith.constant 2 : i32
    %19 = arith.cmpi eq, %arg1, %c2_i32 : i32
    %c1_i32_14 = arith.constant 1 : i32
    %20 = arith.cmpi eq, %arg2, %c1_i32_14 : i32
    %21 = arith.andi %19, %20 : i1
    %22 = arith.extui %21 : i1 to i32
    %c0_i32_15 = arith.constant 0 : i32
    %23 = arith.cmpi ne, %22, %c0_i32_15 : i32
    scf.if %23 {
      %c0_16 = arith.constant 0 : index
      %c0_17 = arith.constant 0 : index
      %24 = vector.load %arg11[%c0_16, %c0_17] : memref<128x128xf32, #tpu.memory_space<vmem>>, vector<128x128xf32>
      %c0_18 = arith.constant 0 : index
      %c0_19 = arith.constant 0 : index
      %25 = vector.load %arg13[%c0_18, %c0_19] : memref<128x1xf32, #tpu.memory_space<vmem>>, vector<128x1xf32>
      %26 = tpu.reciprocal %25 {approx = true} : vector<128x1xf32> -> vector<128x1xf32>
      %27 = vector.broadcast %26 : vector<128x1xf32> to vector<128x128xf32>
      %28 = arith.mulf %24, %27 : vector<128x128xf32>
      %c0_20 = arith.constant 0 : index
      %c0_21 = arith.constant 0 : index
      %29 = vector.load %arg9[%c0_20, %c0_21] : memref<128x128xf32, #tpu.memory_space<vmem>>, vector<128x128xf32>
      tpu.vector_store %arg9[%c0_20, %c0_21], %28 {strides = array<i32>} : memref<128x128xf32, #tpu.memory_space<vmem>>, vector<128x128xf32>,
    } else {
    }
    return
  }
  func.func @transform_0(%arg0: i32, %arg1: i32, %arg2: i32) -> (i32, i32, i32) {
    %c0_i32 = arith.constant 0 : i32
    return %arg1, %arg0, %arg2 : i32, i32, i32
  }
  func.func @transform_1(%arg0: i32, %arg1: i32, %arg2: i32) -> (i32, i32, i32) {
    %c0_i32 = arith.constant 0 : i32
    %c0_i32_0 = arith.constant 0 : i32
    return %arg1, %arg2, %c0_i32 : i32, i32, i32
  }
  func.func @transform_2(%arg0: i32, %arg1: i32, %arg2: i32) -> (i32, i32, i32) {
    %c0_i32 = arith.constant 0 : i32
    %c0_i32_0 = arith.constant 0 : i32
    %c0_i32_1 = arith.constant 0 : i32
    return %arg1, %c0_i32, %c0_i32_0 : i32, i32, i32
  }
  func.func @transform_3(%arg0: i32, %arg1: i32, %arg2: i32) -> (i32, i32) {
    %c0_i32 = arith.constant 0 : i32
    %c0_i32_0 = arith.constant 0 : i32
    %c0_i32_1 = arith.constant 0 : i32
    return %c0_i32, %c0_i32_0 : i32, i32
  }
  func.func @transform_4(%arg0: i32, %arg1: i32, %arg2: i32) -> (i32, i32) {
    %c0_i32 = arith.constant 0 : i32
    %c0_i32_0 = arith.constant 0 : i32
    %c0_i32_1 = arith.constant 0 : i32
    return %c0_i32, %c0_i32_0 : i32, i32
  }
  func.func @transform_5(%arg0: i32, %arg1: i32, %arg2: i32) -> (i32, i32) {
    %c0_i32 = arith.constant 0 : i32
    %c0_i32_0 = arith.constant 0 : i32
    %c0_i32_1 = arith.constant 0 : i32
    return %c0_i32, %c0_i32_0 : i32, i32
  }
  func.func @transform_6(%arg0: i32, %arg1: i32, %arg2: i32) -> (i32, i32) {
    %c0_i32 = arith.constant 0 : i32
    %c0_i32_0 = arith.constant 0 : i32
    return %arg0, %c0_i32 : i32, i32
  }
}

</mosaic_0001>

<llo_original>
// kernel: tpu_custom_call.1
$region0: #{tpu_custom_call.1}
  #allocation0 [shape = 'u32[]', space=smem, size = 0x4, offset = 0x4, fixed_abs, tag = 'smem constant byte address 0x4 - core index']
  #allocation1 [shape = 'u32[144,128]{1,0:T(1,128)}', space=vmem, size = 0x12000, scoped, tag = 'internal scratch']
  #allocation2 [shape = 'f32[128,128]{1,0:T(8,128)}', space=vmem, size = 0x10000, scoped, tag = 'scratch operand']
  #allocation3 [shape = 'f32[128,128]{1,0:T(8,128)}', space=vmem, size = 0x10000, scoped, tag = 'scratch operand']
  #allocation4 [shape = 'f32[128,1]{1,0:T(8,128)}', space=vmem, size = 0x10000, scoped, tag = 'scratch operand']
  #allocation5 [shape = 'f32[128,1]{1,0:T(8,128)}', space=vmem, size = 0x10000, scoped, tag = 'scratch operand']
  %s0 = inlined_call_operand.hbm [shape: bf16[3,256,256], index: 0, kind: input, shape index: {}]
  %s1 = inlined_call_operand.hbm [shape: bf16[3,256,128], index: 1, kind: input, shape index: {}]
  %s2 = inlined_call_operand.vmem [shape: f32[3,1,128], index: 2, kind: input, shape index: {}]
  %s3 = inlined_call_operand.hbm [shape: f32[128,128], index: 3, kind: input, shape index: {}]
  %s4 = inlined_call_operand.vmem [shape: f32[1,128], index: 4, kind: input, shape index: {}]
  %s5 = inlined_call_operand.vmem [shape: f32[1,128], index: 5, kind: input, shape index: {}]
  %s6 = inlined_call_operand.hbm [shape: f32[256,128], index: 6, kind: output, shape index: {}]
  %s7 = sld [smem:[#allocation0]]
  $region85: #{tpu_custom_call.1} parent=0
    _
  %s9 = ssub.s32 1, %s7
  %s10 = scalar_select 0, %s9, %s7
  $region1: #{tpu_custom_call.1} parent=0
    #allocation6 [shape = 'u8[65536]{0}', space=vmem, size = 0x10000, scoped, tag = 'input window, operand 0']
    #allocation7 [shape = 's32[2]{0}', space=sflag, size = 0x8, scoped, tag = 'scoped memory for tpu_custom_call.1']
    #allocation8 [shape = 's32[2]{0}', space=sflag, size = 0x8, scoped, tag = 'scoped memory for tpu_custom_call.1']
    #allocation9 [shape = 'u8[65536]{0}', space=vmem, size = 0x10000, scoped, tag = 'input window, operand 1']
    #allocation10 [shape = 's32[2]{0}', space=sflag, size = 0x8, scoped, tag = 'scoped memory for tpu_custom_call.1']
    #allocation11 [shape = 'u8[65536]{0}', space=vmem, size = 0x10000, scoped, tag = 'input window, operand 3, single buffered']
    #allocation12 [shape = 'u8[131072]{0}', space=vmem, size = 0x20000, scoped, tag = 'output window, operand 0']
    %11 = vsyncpa [#allocation7], 0
    %s12 = scalar_lea.sflag [#allocation7], 1
    %13 = vsyncpa %s12, 0
    %14 = vsyncpa [#allocation10], 0
    %s15 = scalar_lea.sflag [#allocation10], 1
    %16 = vsyncpa %s15, 0
    %17 = vsyncpa [#allocation8], 0
    %s18 = scalar_lea.sflag [#allocation8], 1
    %19 = vsyncpa %s18, 0
    loop: start=0, step=1, limit=14
    $region2: #{tpu_custom_call.1} parent=1 // loop_pre_header
      _
    $region3: #{tpu_custom_call.1} parent=1 // loop_header
      %s21 = sphi 0, %s25
      %p22 = scmp.ge.s32.totalorder %s21, 14
      %s28 = sphi 0, %s47
      %s29 = sphi 0, %s43
      %s30 = sphi 0, %s39
      %s31 = sphi 0, %s28
      %s32 = sphi 0, %s29
      %s33 = sphi 0, %s30
      %s34 = sphi 0, %s31
      %s35 = sphi 0, %s32
      %s36 = sphi 0, %s33
      %s54 = sphi 0, %s56
      %s57 = sphi 0, %s54
      %s58 = sphi 0, %s57
      %s74 = sphi 0, %s58
      %s82 = sphi 0, %s84
      %s85 = sphi 0, %s82
      %s86 = sphi 0, %s85
      %s102 = sphi 0, %s86
      %s108 = sphi 0, %s110
      %s111 = sphi 0, %s108
      %s112 = sphi 0, %s111
      %s128 = sphi 0, %s112
      %s132 = sphi 0, %s132
      %s134 = sphi 0, %s132
      %s135 = sphi 0, %s134
      %s149 = sphi 0, %s135
      %s153 = sphi 0, %s153
      %s155 = sphi 0, %s153
      %s156 = sphi 0, %s155
      %s170 = sphi 0, %s156
      %s174 = sphi 0, %s174
      %s176 = sphi 0, %s174
      %s177 = sphi 0, %s176
      %s191 = sphi 0, %s177
      %s197 = sphi 0, %s199
      %s200 = sphi 0, %s197
      %s201 = sphi 0, %s200
      %s217 = sphi 0, %s201
    $region4: #{tpu_custom_call.1} parent=1 // loop_header_branch
      %24 = sbr.rel (%p22) target = $region8
    $region5: #{tpu_custom_call.1} parent=1 // loop_body
      %s26 = ssub.s32 %s21, 1
      %s27 = ssub.s32 %s21, 2
      %s37 = sadd.s32 1, %s30
      %p38 = scmp.ge.s32.totalorder %s37, 2
      %s39 = scalar_select %p38, 0, %s37
      %s40 = sadd.s32 1, %s29
      %s41 = scalar_select %p38, %s40, %s29
      %p42 = scmp.ge.s32.totalorder %s41, 3
      %s43 = scalar_select %p42, 0, %s41
      %s44 = sadd.s32 1, %s28
      %s45 = scalar_select %p42, %s44, %s28
      %p46 = scmp.ge.s32.totalorder %s45, 2
      %s47 = scalar_select %p46, 0, %s45
      %s48 = ssub.s32 %s29, %s43
      %s49 = ssub.s32 %s28, %s47
      %s50 = sor.u32 %s48, %s49
      %s51 = ssub.s32 %s30, %s39
      %s52 = sor.u32 %s50, %s51
      %p53 = scmp.eq.s32.totalorder %s52, 0
      %s55 = sadd.s32 %s54, 1
      %s56 = scalar_select %p53, %s54, %s55
      %p59 = pneg %p53
      %p60 = scmp.eq.s32.totalorder %s21, 11
      %p61 = por %p59, %p60
      %p62 = scmp.ne.s32.totalorder %s54, %s57
      %p63 = scmp.eq.s32.totalorder %s21, 0
      %p64 = por %p62, %p63
      %p65 = scmp.ne.s32.totalorder %s54, %s57
      %p66 = scmp.eq.s32.totalorder %s26, 11
      %p67 = por %p65, %p66
      %p68 = scmp.ne.s32.totalorder %s57, %s58
      %p69 = scmp.eq.s32.totalorder %s26, 0
      %p70 = por %p68, %p69
      %p71 = scmp.ne.s32.totalorder %s57, %s58
      %p72 = scmp.eq.s32.totalorder %s27, 11
      %p73 = por %p71, %p72
      %p75 = scmp.ne.s32.totalorder %s58, %s74
      %p76 = scmp.eq.s32.totalorder %s27, 0
      %p77 = por %p75, %p76
      %s78 = ssub.s32 %s29, %s43
      %s79 = ssub.s32 %s30, %s39
      %s80 = sor.u32 %s78, %s79
      %p81 = scmp.eq.s32.totalorder %s80, 0
      %s83 = sadd.s32 %s82, 1
      %s84 = scalar_select %p81, %s82, %s83
      %p87 = pneg %p81
      %p88 = scmp.eq.s32.totalorder %s21, 11
      %p89 = por %p87, %p88
      %p90 = scmp.ne.s32.totalorder %s82, %s85
      %p91 = scmp.eq.s32.totalorder %s21, 0
      %p92 = por %p90, %p91
      %p93 = scmp.ne.s32.totalorder %s82, %s85
      %p94 = scmp.eq.s32.totalorder %s26, 11
      %p95 = por %p93, %p94
      %p96 = scmp.ne.s32.totalorder %s85, %s86
      %p97 = scmp.eq.s32.totalorder %s26, 0
      %p98 = por %p96, %p97
      %p99 = scmp.ne.s32.totalorder %s85, %s86
      %p100 = scmp.eq.s32.totalorder %s27, 11
      %p101 = por %p99, %p100
      %p103 = scmp.ne.s32.totalorder %s86, %s102
      %p104 = scmp.eq.s32.totalorder %s27, 0
      %p105 = por %p103, %p104
      %s106 = ssub.s32 %s29, %s43
      %p107 = scmp.eq.s32.totalorder %s106, 0
      %s109 = sadd.s32 %s108, 1
      %s110 = scalar_select %p107, %s108, %s109
      %p113 = pneg %p107
      %p114 = scmp.eq.s32.totalorder %s21, 11
      %p115 = por %p113, %p114
      %p116 = scmp.ne.s32.totalorder %s108, %s111
      %p117 = scmp.eq.s32.totalorder %s21, 0
      %p118 = por %p116, %p117
      %p119 = scmp.ne.s32.totalorder %s108, %s111
      %p120 = scmp.eq.s32.totalorder %s26, 11
      %p121 = por %p119, %p120
      %p122 = scmp.ne.s32.totalorder %s111, %s112
      %p123 = scmp.eq.s32.totalorder %s26, 0
      %p124 = por %p122, %p123
      %p125 = scmp.ne.s32.totalorder %s111, %s112
      %p126 = scmp.eq.s32.totalorder %s27, 11
      %p127 = por %p125, %p126
      %p129 = scmp.ne.s32.totalorder %s112, %s128
      %p130 = scmp.eq.s32.totalorder %s27, 0
      %p131 = por %p129, %p130
      %s133 = sadd.s32 %s132, 1
      %p136 = scmp.eq.s32.totalorder %s21, 11
      %p137 = scmp.ne.s32.totalorder %s132, %s134
      %p138 = scmp.eq.s32.totalorder %s21, 0
      %p139 = por %p137, %p138
      %p140 = scmp.ne.s32.totalorder %s132, %s134
      %p141 = scmp.eq.s32.totalorder %s26, 11
      %p142 = por %p140, %p141
      %p143 = scmp.ne.s32.totalorder %s134, %s135
      %p144 = scmp.eq.s32.totalorder %s26, 0
      %p145 = por %p143, %p144
      %p146 = scmp.ne.s32.totalorder %s134, %s135
      %p147 = scmp.eq.s32.totalorder %s27, 11
      %p148 = por %p146, %p147
      %p150 = scmp.ne.s32.totalorder %s135, %s149
      %p151 = scmp.eq.s32.totalorder %s27, 0
      %p152 = por %p150, %p151
      %s154 = sadd.s32 %s153, 1
      %p157 = scmp.eq.s32.totalorder %s21, 11
      %p158 = scmp.ne.s32.totalorder %s153, %s155
      %p159 = scmp.eq.s32.totalorder %s21, 0
      %p160 = por %p158, %p159
      %p161 = scmp.ne.s32.totalorder %s153, %s155
      %p162 = scmp.eq.s32.totalorder %s26, 11
      %p163 = por %p161, %p162
      %p164 = scmp.ne.s32.totalorder %s155, %s156
      %p165 = scmp.eq.s32.totalorder %s26, 0
      %p166 = por %p164, %p165
      %p167 = scmp.ne.s32.totalorder %s155, %s156
      %p168 = scmp.eq.s32.totalorder %s27, 11
      %p169 = por %p167, %p168
      %p171 = scmp.ne.s32.totalorder %s156, %s170
      %p172 = scmp.eq.s32.totalorder %s27, 0
      %p173 = por %p171, %p172
      %s175 = sadd.s32 %s174, 1
      %p178 = scmp.eq.s32.totalorder %s21, 11
      %p179 = scmp.ne.s32.totalorder %s174, %s176
      %p180 = scmp.eq.s32.totalorder %s21, 0
      %p181 = por %p179, %p180
      %p182 = scmp.ne.s32.totalorder %s174, %s176
      %p183 = scmp.eq.s32.totalorder %s26, 11
      %p184 = por %p182, %p183
      %p185 = scmp.ne.s32.totalorder %s176, %s177
      %p186 = scmp.eq.s32.totalorder %s26, 0
      %p187 = por %p185, %p186
      %p188 = scmp.ne.s32.totalorder %s176, %s177
      %p189 = scmp.eq.s32.totalorder %s27, 11
      %p190 = por %p188, %p189
      %p192 = scmp.ne.s32.totalorder %s177, %s191
      %p193 = scmp.eq.s32.totalorder %s27, 0
      %p194 = por %p192, %p193
      %s195 = ssub.s32 %s28, %s47
      %p196 = scmp.eq.s32.totalorder %s195, 0
      %s198 = sadd.s32 %s197, 1
      %s199 = scalar_select %p196, %s197, %s198
      %p202 = pneg %p196
      %p203 = scmp.eq.s32.totalorder %s21, 11
      %p204 = por %p202, %p203
      %p205 = scmp.ne.s32.totalorder %s197, %s200
      %p206 = scmp.eq.s32.totalorder %s21, 0
      %p207 = por %p205, %p206
      %p208 = scmp.ne.s32.totalorder %s197, %s200
      %p209 = scmp.eq.s32.totalorder %s26, 11
      %p210 = por %p208, %p209
      %p211 = scmp.ne.s32.totalorder %s200, %s201
      %p212 = scmp.eq.s32.totalorder %s26, 0
      %p213 = por %p211, %p212
      %p214 = scmp.ne.s32.totalorder %s200, %s201
      %p215 = scmp.eq.s32.totalorder %s27, 11
      %p216 = por %p214, %p215
      %p218 = scmp.ne.s32.totalorder %s201, %s217
      %p219 = scmp.eq.s32.totalorder %s27, 0
      %p220 = por %p218, %p219
      %p221 = scmp.le.s32.totalorder 1, %s21
      %p222 = scmp.lt.s32.totalorder %s21, 13
      %p223 = pnand %p221, %p222
      %p224 = pneg %p223
      // Predicated region
      $region9: #{tpu_custom_call.1} parent=5 // pred_check
        _
      $region10: #{tpu_custom_call.1} parent=5 // pred_check_branch
        %226 = sbr.rel (%p223) target = $region12
      $region11: #{tpu_custom_call.1} parent=5 // pred_region
        %s227 = ssub.s32 %s21, 1
        // Predicated region
        $region13: #{tpu_custom_call.1} parent=11 // pred_check
          %p228 = pneg %p145
        $region14: #{tpu_custom_call.1} parent=11 // pred_check_branch
          %230 = sbr.rel (%p228) target = $region16
        $region15: #{tpu_custom_call.1} parent=11 // pred_region
          %s232 = ssub.s32 2048, 2048
          %233 = vsyncadd [#allocation10], %s232
          %s234 = sshll.u32 [#allocation11], 4
          %s235 = int_to_ptr.vmem [resolvable:$true] %s234
          %240 = dma.hbm_to_vmem [thread:$0]  %s3, 2048, %s235, [#allocation10], 128, 128, 8
        $region16: #{tpu_custom_call.1} parent=11 // pred_fallthru
          _
        // Predicated region
        $region17: #{tpu_custom_call.1} parent=11 // pred_check
          %p241 = pneg %p166
        $region18: #{tpu_custom_call.1} parent=11 // pred_check_branch
          %243 = sbr.rel (%p241) target = $region20
        $region19: #{tpu_custom_call.1} parent=11 // pred_region
          _
        $region20: #{tpu_custom_call.1} parent=11 // pred_fallthru
          _
        // Predicated region
        $region21: #{tpu_custom_call.1} parent=11 // pred_check
          %p244 = pneg %p187
        $region22: #{tpu_custom_call.1} parent=11 // pred_check_branch
          %246 = sbr.rel (%p244) target = $region24
        $region23: #{tpu_custom_call.1} parent=11 // pred_region
          _
        $region24: #{tpu_custom_call.1} parent=11 // pred_fallthru
          _
      $region12: #{tpu_custom_call.1} parent=5 // pred_fallthru
        _
      %p247 = scmp.lt.s32.totalorder %s21, 12
      // Predicated region
      $region25: #{tpu_custom_call.1} parent=5 // pred_check
        %p248 = pneg %p247
      $region26: #{tpu_custom_call.1} parent=5 // pred_check_branch
        %250 = sbr.rel (%p248) target = $region28
      $region27: #{tpu_custom_call.1} parent=5 // pred_region
        // Predicated region
        $region29: #{tpu_custom_call.1} parent=27 // pred_check
          %p251 = pneg %p64
        $region30: #{tpu_custom_call.1} parent=27 // pred_check_branch
          %253 = sbr.rel (%p251) target = $region32
        $region31: #{tpu_custom_call.1} parent=27 // pred_region
          %s254 = sand.u32 %s54, 1
          %s255 = scalar_lea.sflag [#allocation7], %s254
          %s256 = sand.u32 %s54, 1
          %s257 = smul.addr %s256, 64
          %s258 = scalar_lea.vmem [#allocation6], %s257
          %s259 = smul.u32 16, %s28
          %s261 = ssub.s32 1024, 1024
          %262 = vsyncadd %s255, %s261
          %s263 = smul.addr %s259, 2
          %s264 = sadd.s32 %s30, %s263
          %s265 = smul.addr %s29, 64
          %s266 = sadd.s32 %s264, %s265
          %s267 = smul.addr %s266, 64
          %s268 = scalar_lea.hbm %s0, %s267
          %s269 = sshll.u32 %s258, 4
          %s270 = int_to_ptr.vmem [resolvable:$true] %s269
          %275 = dma.hbm_to_vmem [thread:$0]  %s268, 1024, %s270, %s255, 128, 64, 4
        $region32: #{tpu_custom_call.1} parent=27 // pred_fallthru
          _
        // Predicated region
        $region33: #{tpu_custom_call.1} parent=27 // pred_check
          %p276 = pneg %p92
        $region34: #{tpu_custom_call.1} parent=27 // pred_check_branch
          %278 = sbr.rel (%p276) target = $region36
        $region35: #{tpu_custom_call.1} parent=27 // pred_region
          %s279 = sand.u32 %s21, 1
          %s280 = scalar_lea.sflag [#allocation10], %s279
          %s281 = sand.u32 %s82, 1
          %s282 = smul.addr %s281, 64
          %s283 = scalar_lea.vmem [#allocation9], %s282
          %s284 = smul.u32 16, %s30
          %s286 = ssub.s32 1024, 1024
          %287 = vsyncadd %s280, %s286
          %s288 = smul.addr %s29, 32
          %s289 = sadd.s32 %s284, %s288
          %s290 = smul.addr %s289, 64
          %s291 = scalar_lea.hbm %s1, %s290
          %s292 = sshll.u32 %s283, 4
          %s293 = int_to_ptr.vmem [resolvable:$true] %s292
          %298 = dma.hbm_to_vmem [thread:$0]  %s291, 1024, %s293, %s280, 64, 64, 4
        $region36: #{tpu_custom_call.1} parent=27 // pred_fallthru
          _
        // Predicated region
        $region37: #{tpu_custom_call.1} parent=27 // pred_check
          %p299 = pneg %p118
        $region38: #{tpu_custom_call.1} parent=27 // pred_check_branch
          %301 = sbr.rel (%p299) target = $region40
        $region39: #{tpu_custom_call.1} parent=27 // pred_region
          %p302 = scmp.lt.s32.totalorder %s29, 2
          %s303 = scalar_select %p302, %s29, 2
          %s304 = scalar_lea.vmem %s2, %s303
        $region40: #{tpu_custom_call.1} parent=27 // pred_fallthru
          _
      $region28: #{tpu_custom_call.1} parent=5 // pred_fallthru
        _
      %p305 = scmp.le.s32.totalorder 1, %s21
      %p306 = scmp.lt.s32.totalorder %s21, 13
      %p307 = pnand %p305, %p306
      %p308 = pneg %p307
      // Predicated region
      $region41: #{tpu_custom_call.1} parent=5 // pred_check
        _
      $region42: #{tpu_custom_call.1} parent=5 // pred_check_branch
        %310 = sbr.rel (%p307) target = $region44
      $region43: #{tpu_custom_call.1} parent=5 // pred_region
        %s311 = ssub.s32 %s21, 1
        %s312 = sand.u32 %s57, 1
        %s313 = scalar_lea.sflag [#allocation7], %s312
        %s314 = sand.u32 %s57, 1
        %s315 = smul.addr %s314, 64
        %s316 = scalar_lea.vmem [#allocation6], %s315
        // Predicated region
        $region45: #{tpu_custom_call.1} parent=43 // pred_check
          %p317 = pneg %p70
        $region46: #{tpu_custom_call.1} parent=43 // pred_check_branch
          %319 = sbr.rel (%p317) target = $region48
        $region47: #{tpu_custom_call.1} parent=43 // pred_region
          %320 = dma.done %s313, 1024
        $region48: #{tpu_custom_call.1} parent=43 // pred_fallthru
          _
        %s321 = sand.u32 %s26, 1
        %s322 = scalar_lea.sflag [#allocation10], %s321
        %s323 = sand.u32 %s85, 1
        %s324 = smul.addr %s323, 64
        %s325 = scalar_lea.vmem [#allocation9], %s324
        // Predicated region
        $region49: #{tpu_custom_call.1} parent=43 // pred_check
          %p326 = pneg %p98
        $region50: #{tpu_custom_call.1} parent=43 // pred_check_branch
          %328 = sbr.rel (%p326) target = $region52
        $region51: #{tpu_custom_call.1} parent=43 // pred_region
          %329 = dma.done %s322, 1024
        $region52: #{tpu_custom_call.1} parent=43 // pred_fallthru
          _
        // Predicated region
        $region53: #{tpu_custom_call.1} parent=43 // pred_check
          %p330 = pneg %p145
        $region54: #{tpu_custom_call.1} parent=43 // pred_check_branch
          %332 = sbr.rel (%p330) target = $region56
        $region55: #{tpu_custom_call.1} parent=43 // pred_region
          %333 = dma.done [#allocation10], 2048
        $region56: #{tpu_custom_call.1} parent=43 // pred_fallthru
          _
        %s334 = sand.u32 %s57, 1
        %s335 = scalar_lea.sflag [#allocation7], %s334
        %s336 = sand.u32 %s57, 1
        %s337 = smul.addr %s336, 64
        %s338 = scalar_lea.vmem [#allocation6], %s337
        %p339 = pneg %p70
        %p340 = pneg %p67
        %s341 = sand.u32 %s26, 1
        %s342 = scalar_lea.sflag [#allocation10], %s341
        %s343 = sand.u32 %s85, 1
        %s344 = smul.addr %s343, 64
        %s345 = scalar_lea.vmem [#allocation9], %s344
        %p346 = pneg %p98
        %p347 = pneg %p95
        %p348 = scmp.lt.s32.totalorder %s32, 2
        %s349 = scalar_select %p348, %s32, 2
        %s350 = scalar_lea.vmem %s2, %s349
        %p351 = pneg %p124
        %p352 = pneg %p121
        %p353 = pneg %p145
        %p354 = pneg %p142
        %p355 = pneg %p166
        %p356 = pneg %p163
        %p357 = pneg %p187
        %p358 = pneg %p184
        %p359 = pneg %p213
        %p360 = pneg %p210
        %s361 = sand.u32 %s200, 1
        %s362 = scalar_lea.sflag [#allocation8], %s361
        %s363 = sand.u32 %s200, 1
        %s364 = smul.addr %s363, 128
        %s365 = scalar_lea.vmem [#allocation12], %s364
        %s366 = smul.u32 16, %s31
        %s367 = smul.u32 16, %s33
        %p368 = scmp.lt.s32.totalorder %s32, 2
        %s369 = scalar_select %p368, %s32, 2
        %s370 = scalar_lea.vmem %s2, %s369
        %s371 = smul.u32 16, %s31
        %p373 = scmp.eq.s32.totalorder %s32, 0
        %p374 = scmp.eq.s32.totalorder %s33, 0
        %p375 = pnand %p373, %p374
        %p376 = pneg %p375
        // Predicated region
        $region57: #{tpu_custom_call.1} parent=43 // pred_check
          _
        $region58: #{tpu_custom_call.1} parent=43 // pred_check_branch
          %378 = sbr.rel (%p375) target = $region60
        $region59: #{tpu_custom_call.1} parent=43 // pred_region
          %vm379 = vcmask 7168
          %380 = vst.msk [vmem:[#allocation4] sm:$0xff] %vm379, -inf
          %381 = vst.msk [vmem:[#allocation4 + $0x8] sm:$0xff] %vm379, -inf
          %382 = vst.msk [vmem:[#allocation4 + $0x10] sm:$0xff] %vm379, -inf
          %383 = vst.msk [vmem:[#allocation4 + $0x18] sm:$0xff] %vm379, -inf
          %384 = vst.msk [vmem:[#allocation4 + $0x20] sm:$0xff] %vm379, -inf
          %385 = vst.msk [vmem:[#allocation4 + $0x28] sm:$0xff] %vm379, -inf
          %386 = vst.msk [vmem:[#allocation4 + $0x30] sm:$0xff] %vm379, -inf
          %387 = vst.msk [vmem:[#allocation4 + $0x38] sm:$0xff] %vm379, -inf
          %388 = vst.msk [vmem:[#allocation4 + $0x40] sm:$0xff] %vm379, -inf
          %389 = vst.msk [vmem:[#allocation4 + $0x48] sm:$0xff] %vm379, -inf
          %390 = vst.msk [vmem:[#allocation4 + $0x50] sm:$0xff] %vm379, -inf
          %391 = vst.msk [vmem:[#allocation4 + $0x58] sm:$0xff] %vm379, -inf
          %392 = vst.msk [vmem:[#allocation4 + $0x60] sm:$0xff] %vm379, -inf
          %393 = vst.msk [vmem:[#allocation4 + $0x68] sm:$0xff] %vm379, -inf
          %394 = vst.msk [vmem:[#allocation4 + $0x70] sm:$0xff] %vm379, -inf
          %395 = vst.msk [vmem:[#allocation4 + $0x78] sm:$0xff] %vm379, -inf
          %396 = vst.msk [vmem:[#allocation5] sm:$0xff] %vm379, 0.0
          %397 = vst.msk [vmem:[#allocation5 + $0x8] sm:$0xff] %vm379, 0.0
          %398 = vst.msk [vmem:[#allocation5 + $0x10] sm:$0xff] %vm379, 0.0
          %399 = vst.msk [vmem:[#allocation5 + $0x18] sm:$0xff] %vm379, 0.0
          %400 = vst.msk [vmem:[#allocation5 + $0x20] sm:$0xff] %vm379, 0.0
          %401 = vst.msk [vmem:[#allocation5 + $0x28] sm:$0xff] %vm379, 0.0
          %402 = vst.msk [vmem:[#allocation5 + $0x30] sm:$0xff] %vm379, 0.0
          %403 = vst.msk [vmem:[#allocation5 + $0x38] sm:$0xff] %vm379, 0.0
          %404 = vst.msk [vmem:[#allocation5 + $0x40] sm:$0xff] %vm379, 0.0
          %405 = vst.msk [vmem:[#allocation5 + $0x48] sm:$0xff] %vm379, 0.0
          %406 = vst.msk [vmem:[#allocation5 + $0x50] sm:$0xff] %vm379, 0.0
          %407 = vst.msk [vmem:[#allocation5 + $0x58] sm:$0xff] %vm379, 0.0
          %408 = vst.msk [vmem:[#allocation5 + $0x60] sm:$0xff] %vm379, 0.0
          %409 = vst.msk [vmem:[#allocation5 + $0x68] sm:$0xff] %vm379, 0.0
          %410 = vst.msk [vmem:[#allocation5 + $0x70] sm:$0xff] %vm379, 0.0
          %411 = vst.msk [vmem:[#allocation5 + $0x78] sm:$0xff] %vm379, 0.0
          %412 = vst [vmem:[#allocation3] sm:$0xff] 0.0
          %413 = vst [vmem:[#allocation3 + $0x8] sm:$0xff] 0.0
          %414 = vst [vmem:[#allocation3 + $0x10] sm:$0xff] 0.0
          %415 = vst [vmem:[#allocation3 + $0x18] sm:$0xff] 0.0
          %416 = vst [vmem:[#allocation3 + $0x20] sm:$0xff] 0.0
          %417 = vst [vmem:[#allocation3 + $0x28] sm:$0xff] 0.0
          %418 = vst [vmem:[#allocation3 + $0x30] sm:$0xff] 0.0
          %419 = vst [vmem:[#allocation3 + $0x38] sm:$0xff] 0.0
          %420 = vst [vmem:[#allocation3 + $0x40] sm:$0xff] 0.0
          %421 = vst [vmem:[#allocation3 + $0x48] sm:$0xff] 0.0
          %422 = vst [vmem:[#allocation3 + $0x50] sm:$0xff] 0.0
          %423 = vst [vmem:[#allocation3 + $0x58] sm:$0xff] 0.0
          %424 = vst [vmem:[#allocation3 + $0x60] sm:$0xff] 0.0
          %425 = vst [vmem:[#allocation3 + $0x68] sm:$0xff] 0.0
          %426 = vst [vmem:[#allocation3 + $0x70] sm:$0xff] 0.0
          %427 = vst [vmem:[#allocation3 + $0x78] sm:$0xff] 0.0
        $region60: #{tpu_custom_call.1} parent=43 // pred_fallthru
          _
        // Predicated region
        $region61: #{tpu_custom_call.1} parent=43 // pred_check
          %p428 = pneg %p374
        $region62: #{tpu_custom_call.1} parent=43 // pred_check_branch
          %430 = sbr.rel (%p428) target = $region64
        $region63: #{tpu_custom_call.1} parent=43 // pred_region
          %431 = vst [vmem:[#allocation2] sm:$0xff] 0.0
          %432 = vst [vmem:[#allocation2 + $0x8] sm:$0xff] 0.0
          %433 = vst [vmem:[#allocation2 + $0x10] sm:$0xff] 0.0
          %434 = vst [vmem:[#allocation2 + $0x18] sm:$0xff] 0.0
          %435 = vst [vmem:[#allocation2 + $0x20] sm:$0xff] 0.0
          %436 = vst [vmem:[#allocation2 + $0x28] sm:$0xff] 0.0
          %437 = vst [vmem:[#allocation2 + $0x30] sm:$0xff] 0.0
          %438 = vst [vmem:[#allocation2 + $0x38] sm:$0xff] 0.0
          %439 = vst [vmem:[#allocation2 + $0x40] sm:$0xff] 0.0
          %440 = vst [vmem:[#allocation2 + $0x48] sm:$0xff] 0.0
          %441 = vst [vmem:[#allocation2 + $0x50] sm:$0xff] 0.0
          %442 = vst [vmem:[#allocation2 + $0x58] sm:$0xff] 0.0
          %443 = vst [vmem:[#allocation2 + $0x60] sm:$0xff] 0.0
          %444 = vst [vmem:[#allocation2 + $0x68] sm:$0xff] 0.0
          %445 = vst [vmem:[#allocation2 + $0x70] sm:$0xff] 0.0
          %446 = vst [vmem:[#allocation2 + $0x78] sm:$0xff] 0.0
        $region64: #{tpu_custom_call.1} parent=43 // pred_fallthru
          _
        %v447 = vld [vmem:[#allocation2] sm:$0xff]
        %v448 = vld [vmem:[#allocation2 + $0x8] sm:$0xff]
        %v449 = vld [vmem:[#allocation2 + $0x10] sm:$0xff]
        %v450 = vld [vmem:[#allocation2 + $0x18] sm:$0xff]
        %v451 = vld [vmem:[#allocation2 + $0x20] sm:$0xff]
        %v452 = vld [vmem:[#allocation2 + $0x28] sm:$0xff]
        %v453 = vld [vmem:[#allocation2 + $0x30] sm:$0xff]
        %v454 = vld [vmem:[#allocation2 + $0x38] sm:$0xff]
        %v455 = vld [vmem:[#allocation2 + $0x40] sm:$0xff]
        %v456 = vld [vmem:[#allocation2 + $0x48] sm:$0xff]
        %v457 = vld [vmem:[#allocation2 + $0x50] sm:$0xff]
        %v458 = vld [vmem:[#allocation2 + $0x58] sm:$0xff]
        %v459 = vld [vmem:[#allocation2 + $0x60] sm:$0xff]
        %v460 = vld [vmem:[#allocation2 + $0x68] sm:$0xff]
        %v461 = vld [vmem:[#allocation2 + $0x70] sm:$0xff]
        %v462 = vld [vmem:[#allocation2 + $0x78] sm:$0xff]
        %v463 = vld [vmem:[%s316] sm:$0xf]
        %v464 = vld [vmem:[%s316 + $0x4] sm:$0xf]
        %v465 = vld [vmem:[%s316 + $0x8] sm:$0xf]
        %v466 = vld [vmem:[%s316 + $0xc] sm:$0xf]
        %v467 = vld [vmem:[%s316 + $0x10] sm:$0xf]
        %v468 = vld [vmem:[%s316 + $0x14] sm:$0xf]
        %v469 = vld [vmem:[%s316 + $0x18] sm:$0xf]
        %v470 = vld [vmem:[%s316 + $0x1c] sm:$0xf]
        %v471 = vld [vmem:[%s316 + $0x20] sm:$0xf]
        %v472 = vld [vmem:[%s316 + $0x24] sm:$0xf]
        %v473 = vld [vmem:[%s316 + $0x28] sm:$0xf]
        %v474 = vld [vmem:[%s316 + $0x2c] sm:$0xf]
        %v475 = vld [vmem:[%s316 + $0x30] sm:$0xf]
        %v476 = vld [vmem:[%s316 + $0x34] sm:$0xf]
        %v477 = vld [vmem:[%s316 + $0x38] sm:$0xf]
        %v478 = vld [vmem:[%s316 + $0x3c] sm:$0xf]
        %v479 = vld [vmem:[%s325] sm:$0xf]
        %v480 = vld [vmem:[%s325 + $0x4] sm:$0xf]
        %v481 = vld [vmem:[%s325 + $0x8] sm:$0xf]
        %v482 = vld [vmem:[%s325 + $0xc] sm:$0xf]
        %v483 = vld [vmem:[%s325 + $0x10] sm:$0xf]
        %v484 = vld [vmem:[%s325 + $0x14] sm:$0xf]
        %v485 = vld [vmem:[%s325 + $0x18] sm:$0xf]
        %v486 = vld [vmem:[%s325 + $0x1c] sm:$0xf]
        %v487 = vld [vmem:[%s325 + $0x20] sm:$0xf]
        %v488 = vld [vmem:[%s325 + $0x24] sm:$0xf]
        %v489 = vld [vmem:[%s325 + $0x28] sm:$0xf]
        %v490 = vld [vmem:[%s325 + $0x2c] sm:$0xf]
        %v491 = vld [vmem:[%s325 + $0x30] sm:$0xf]
        %v492 = vld [vmem:[%s325 + $0x34] sm:$0xf]
        %v493 = vld [vmem:[%s325 + $0x38] sm:$0xf]
        %v494 = vld [vmem:[%s325 + $0x3c] sm:$0xf]
        %v511 = vunpack.c.l.b16 %v463
        %v512 = vunpack.c.l.b16 %v464
        %v513 = vunpack.c.l.b16 %v465
        %v514 = vunpack.c.l.b16 %v466
        %v515 = vunpack.c.l.b16 %v467
        %v516 = vunpack.c.l.b16 %v468
        %v517 = vunpack.c.l.b16 %v469
        %v518 = vunpack.c.l.b16 %v470
        %v519 = vunpack.c.l.b16 %v471
        %v520 = vunpack.c.l.b16 %v472
        %v521 = vunpack.c.l.b16 %v473
        %v522 = vunpack.c.l.b16 %v474
        %v523 = vunpack.c.l.b16 %v475
        %v524 = vunpack.c.l.b16 %v476
        %v525 = vunpack.c.l.b16 %v477
        %v526 = vunpack.c.l.b16 %v478
        %v527 = vpack.c.b16 %v512, %v511
        %v528 = vpack.c.b16 %v514, %v513
        %v529 = vpack.c.b16 %v516, %v515
        %v530 = vpack.c.b16 %v518, %v517
        %v531 = vpack.c.b16 %v520, %v519
        %v532 = vpack.c.b16 %v522, %v521
        %v533 = vpack.c.b16 %v524, %v523
        %v534 = vpack.c.b16 %v526, %v525
        %v559 = vunpack.c.l.b16 %v479
        %v560 = vunpack.c.l.b16 %v480
        %v561 = vunpack.c.l.b16 %v481
        %v562 = vunpack.c.l.b16 %v482
        %v563 = vunpack.c.l.b16 %v483
        %v564 = vunpack.c.l.b16 %v484
        %v565 = vunpack.c.l.b16 %v485
        %v566 = vunpack.c.l.b16 %v486
        %v567 = vunpack.c.l.b16 %v487
        %v568 = vunpack.c.l.b16 %v488
        %v569 = vunpack.c.l.b16 %v489
        %v570 = vunpack.c.l.b16 %v490
        %v571 = vunpack.c.l.b16 %v491
        %v572 = vunpack.c.l.b16 %v492
        %v573 = vunpack.c.l.b16 %v493
        %v574 = vunpack.c.l.b16 %v494
        %v575 = vpack.c.b16 %v560, %v559
        %v576 = vpack.c.b16 %v562, %v561
        %v577 = vpack.c.b16 %v564, %v563
        %v578 = vpack.c.b16 %v566, %v565
        %v579 = vpack.c.b16 %v568, %v567
        %v580 = vpack.c.b16 %v570, %v569
        %v581 = vpack.c.b16 %v572, %v571
        %v582 = vpack.c.b16 %v574, %v573
        %591 = vmatprep.subr.bf16.mxu0 0
        %592 = vmatpush1.bf16.msra.mxu0 %v582
        %593 = vmatprep.subr.bf16.mxu0 0
        %594 = vmatpush1.bf16.msra.mxu0 %v581
        %595 = vmatprep.subr.bf16.mxu0 0
        %596 = vmatpush1.bf16.msra.mxu0 %v580
        %597 = vmatprep.subr.bf16.mxu0 0
        %598 = vmatpush1.bf16.msra.mxu0 %v579
        %599 = vmatprep.subr.bf16.mxu0 0
        %600 = vmatpush1.bf16.msra.mxu0 %v578
        %601 = vmatprep.subr.bf16.mxu0 0
        %602 = vmatpush1.bf16.msra.mxu0 %v577
        %603 = vmatprep.subr.bf16.mxu0 0
        %604 = vmatpush1.bf16.msra.mxu0 %v576
        %605 = vmatprep.subr.bf16.mxu0 0
        %606 = vmatpush1.bf16.msra.mxu0 %v575
        %607 = vmatprep.subr.bf16.mxu0 0
        %608 = vmatpush2.bf16.msra.mxu0 0
        %609 = vmatprep.subr.bf16.mxu0 0
        %610 = vmatpush2.bf16.msra.mxu0 0
        %611 = vmatprep.subr.bf16.mxu0 0
        %612 = vmatpush2.bf16.msra.mxu0 0
        %613 = vmatprep.subr.bf16.mxu0 0
        %614 = vmatpush2.bf16.msra.mxu0 0
        %615 = vmatprep.subr.bf16.mxu0 0
        %616 = vmatpush2.bf16.msra.mxu0 0
        %617 = vmatprep.subr.bf16.mxu0 0
        %618 = vmatpush2.bf16.msra.mxu0 0
        %619 = vmatprep.subr.bf16.mxu0 0
        %620 = vmatpush2.bf16.msra.mxu0 0
        %621 = vmatprep.subr.bf16.mxu0 0
        %622 = vmatpush2.bf16.msra.mxu0 0
        %623 = vmatprep.mubr.bf16.mxu0 0
        %624 = vmatmul.mubr.bf16.gmra.mxu0 %v527
        %v625 = vpop.f32.mrf.mxu0
        %v626 = vadd.f32 0.0, %v625
        %v627 = vpop.f32.mrf.mxu0
        %v628 = vpop.f32.mrf.mxu0
        %v629 = vadd.f32 0.0, %v628
        %v630 = vpop.f32.mrf.mxu0
        %631 = vmatprep.mubr.bf16.mxu0 0
        %632 = vmatmul.mubr.bf16.gmra.mxu0 %v528
        %v633 = vpop.f32.mrf.mxu0
        %v634 = vadd.f32 0.0, %v633
        %v635 = vpop.f32.mrf.mxu0
        %v636 = vpop.f32.mrf.mxu0
        %v637 = vadd.f32 0.0, %v636
        %v638 = vpop.f32.mrf.mxu0
        %639 = vmatprep.mubr.bf16.mxu0 0
        %640 = vmatmul.mubr.bf16.gmra.mxu0 %v529
        %v641 = vpop.f32.mrf.mxu0
        %v642 = vadd.f32 0.0, %v641
        %v643 = vpop.f32.mrf.mxu0
        %v644 = vpop.f32.mrf.mxu0
        %v645 = vadd.f32 0.0, %v644
        %v646 = vpop.f32.mrf.mxu0
        %647 = vmatprep.mubr.bf16.mxu0 0
        %648 = vmatmul.mubr.bf16.gmra.mxu0 %v530
        %v649 = vpop.f32.mrf.mxu0
        %v650 = vadd.f32 0.0, %v649
        %v651 = vpop.f32.mrf.mxu0
        %v652 = vpop.f32.mrf.mxu0
        %v653 = vadd.f32 0.0, %v652
        %v654 = vpop.f32.mrf.mxu0
        %655 = vmatprep.mubr.bf16.mxu0 0
        %656 = vmatmul.mubr.bf16.gmra.mxu0 %v531
        %v657 = vpop.f32.mrf.mxu0
        %v658 = vadd.f32 0.0, %v657
        %v659 = vpop.f32.mrf.mxu0
        %v660 = vpop.f32.mrf.mxu0
        %v661 = vadd.f32 0.0, %v660
        %v662 = vpop.f32.mrf.mxu0
        %663 = vmatprep.mubr.bf16.mxu0 0
        %664 = vmatmul.mubr.bf16.gmra.mxu0 %v532
        %v665 = vpop.f32.mrf.mxu0
        %v666 = vadd.f32 0.0, %v665
        %v667 = vpop.f32.mrf.mxu0
        %v668 = vpop.f32.mrf.mxu0
        %v669 = vadd.f32 0.0, %v668
        %v670 = vpop.f32.mrf.mxu0
        %671 = vmatprep.mubr.bf16.mxu0 0
        %672 = vmatmul.mubr.bf16.gmra.mxu0 %v533
        %v673 = vpop.f32.mrf.mxu0
        %v674 = vadd.f32 0.0, %v673
        %v675 = vpop.f32.mrf.mxu0
        %v676 = vpop.f32.mrf.mxu0
        %v677 = vadd.f32 0.0, %v676
        %v678 = vpop.f32.mrf.mxu0
        %679 = vmatprep.mubr.bf16.mxu0 0
        %680 = vmatmul.mubr.bf16.gmra.mxu0 %v534
        %v681 = vpop.f32.mrf.mxu0
        %v682 = vadd.f32 0.0, %v681
        %v683 = vpop.f32.mrf.mxu0
        %v684 = vpop.f32.mrf.mxu0
        %v685 = vadd.f32 0.0, %v684
        %v686 = vpop.f32.mrf.mxu0
        %687 = vdwg.mxu0
        %v688 = vadd.f32 %v447, %v626
        %v689 = vadd.f32 %v448, %v629
        %v690 = vadd.f32 %v449, %v634
        %v691 = vadd.f32 %v450, %v637
        %v692 = vadd.f32 %v451, %v642
        %v693 = vadd.f32 %v452, %v645
        %v694 = vadd.f32 %v453, %v650
        %v695 = vadd.f32 %v454, %v653
        %v696 = vadd.f32 %v455, %v658
        %v697 = vadd.f32 %v456, %v661
        %v698 = vadd.f32 %v457, %v666
        %v699 = vadd.f32 %v458, %v669
        %v700 = vadd.f32 %v459, %v674
        %v701 = vadd.f32 %v460, %v677
        %v702 = vadd.f32 %v461, %v682
        %v703 = vadd.f32 %v462, %v685
        %704 = vst [vmem:[#allocation2] sm:$0xff] %v688
        %705 = vst [vmem:[#allocation2 + $0x8] sm:$0xff] %v689
        %706 = vst [vmem:[#allocation2 + $0x10] sm:$0xff] %v690
        %707 = vst [vmem:[#allocation2 + $0x18] sm:$0xff] %v691
        %708 = vst [vmem:[#allocation2 + $0x20] sm:$0xff] %v692
        %709 = vst [vmem:[#allocation2 + $0x28] sm:$0xff] %v693
        %710 = vst [vmem:[#allocation2 + $0x30] sm:$0xff] %v694
        %711 = vst [vmem:[#allocation2 + $0x38] sm:$0xff] %v695
        %712 = vst [vmem:[#allocation2 + $0x40] sm:$0xff] %v696
        %713 = vst [vmem:[#allocation2 + $0x48] sm:$0xff] %v697
        %714 = vst [vmem:[#allocation2 + $0x50] sm:$0xff] %v698
        %715 = vst [vmem:[#allocation2 + $0x58] sm:$0xff] %v699
        %716 = vst [vmem:[#allocation2 + $0x60] sm:$0xff] %v700
        %717 = vst [vmem:[#allocation2 + $0x68] sm:$0xff] %v701
        %718 = vst [vmem:[#allocation2 + $0x70] sm:$0xff] %v702
        %719 = vst [vmem:[#allocation2 + $0x78] sm:$0xff] %v703
        %p720 = scmp.eq.s32.totalorder %s33, 1
        // Predicated region
        $region65: #{tpu_custom_call.1} parent=43 // pred_check
          %p721 = pneg %p720
        $region66: #{tpu_custom_call.1} parent=43 // pred_check_branch
          %723 = sbr.rel (%p721) target = $region68
        $region67: #{tpu_custom_call.1} parent=43 // pred_region
          %v724 = vld [vmem:[#allocation2] sm:$0xff]
          %v725 = vld [vmem:[#allocation2 + $0x8] sm:$0xff]
          %v726 = vld [vmem:[#allocation2 + $0x10] sm:$0xff]
          %v727 = vld [vmem:[#allocation2 + $0x18] sm:$0xff]
          %v728 = vld [vmem:[#allocation2 + $0x20] sm:$0xff]
          %v729 = vld [vmem:[#allocation2 + $0x28] sm:$0xff]
          %v730 = vld [vmem:[#allocation2 + $0x30] sm:$0xff]
          %v731 = vld [vmem:[#allocation2 + $0x38] sm:$0xff]
          %v732 = vld [vmem:[#allocation2 + $0x40] sm:$0xff]
          %v733 = vld [vmem:[#allocation2 + $0x48] sm:$0xff]
          %v734 = vld [vmem:[#allocation2 + $0x50] sm:$0xff]
          %v735 = vld [vmem:[#allocation2 + $0x58] sm:$0xff]
          %v736 = vld [vmem:[#allocation2 + $0x60] sm:$0xff]
          %v737 = vld [vmem:[#allocation2 + $0x68] sm:$0xff]
          %v738 = vld [vmem:[#allocation2 + $0x70] sm:$0xff]
          %v739 = vld [vmem:[#allocation2 + $0x78] sm:$0xff]
          %v740 = vld [vmem:[%s370] sm:$0x1]
          %v742 = vlaneseq
          %v743 = vshrl.u32 %v742, 7
          %v744 = vsub.s32 0, %v743
          %v745 = vrot.slane %v740, %v744
          %v747 = vadd.f32 %v724, %v745
          %v748 = vadd.f32 %v725, %v745
          %v749 = vadd.f32 %v726, %v745
          %v750 = vadd.f32 %v727, %v745
          %v751 = vadd.f32 %v728, %v745
          %v752 = vadd.f32 %v729, %v745
          %v753 = vadd.f32 %v730, %v745
          %v754 = vadd.f32 %v731, %v745
          %v755 = vadd.f32 %v732, %v745
          %v756 = vadd.f32 %v733, %v745
          %v757 = vadd.f32 %v734, %v745
          %v758 = vadd.f32 %v735, %v745
          %v759 = vadd.f32 %v736, %v745
          %v760 = vadd.f32 %v737, %v745
          %v761 = vadd.f32 %v738, %v745
          %v762 = vadd.f32 %v739, %v745
          %v763 = vld [vmem:[#allocation11] sm:$0xff]
          %v764 = vld [vmem:[#allocation11 + $0x8] sm:$0xff]
          %v765 = vld [vmem:[#allocation11 + $0x10] sm:$0xff]
          %v766 = vld [vmem:[#allocation11 + $0x18] sm:$0xff]
          %v767 = vld [vmem:[#allocation11 + $0x20] sm:$0xff]
          %v768 = vld [vmem:[#allocation11 + $0x28] sm:$0xff]
          %v769 = vld [vmem:[#allocation11 + $0x30] sm:$0xff]
          %v770 = vld [vmem:[#allocation11 + $0x38] sm:$0xff]
          %v771 = vld [vmem:[#allocation11 + $0x40] sm:$0xff]
          %v772 = vld [vmem:[#allocation11 + $0x48] sm:$0xff]
          %v773 = vld [vmem:[#allocation11 + $0x50] sm:$0xff]
          %v774 = vld [vmem:[#allocation11 + $0x58] sm:$0xff]
          %v775 = vld [vmem:[#allocation11 + $0x60] sm:$0xff]
          %v776 = vld [vmem:[#allocation11 + $0x68] sm:$0xff]
          %v777 = vld [vmem:[#allocation11 + $0x70] sm:$0xff]
          %v778 = vld [vmem:[#allocation11 + $0x78] sm:$0xff]
          %v779 = vld [vmem:[%s4] sm:$0x1]
          %v781 = vlaneseq
          %v782 = vshrl.u32 %v781, 7
          %v783 = vsub.s32 0, %v782
          %v784 = vrot.slane %v779, %v783
          %786 = vmatprep.subr.mxu0 0.0
          %787 = vmatpush1.msra.mxu0 %v778
          %788 = vmatprep.subr.mxu0 0.0
          %789 = vmatpush1.msra.mxu0 %v777
          %790 = vmatprep.subr.mxu0 0.0
          %791 = vmatpush1.msra.mxu0 %v776
          %792 = vmatprep.subr.mxu0 0.0
          %793 = vmatpush1.msra.mxu0 %v775
          %794 = vmatprep.subr.mxu0 0.0
          %795 = vmatpush1.msra.mxu0 %v774
          %796 = vmatprep.subr.mxu0 0.0
          %797 = vmatpush1.msra.mxu0 %v773
          %798 = vmatprep.subr.mxu0 0.0
          %799 = vmatpush1.msra.mxu0 %v772
          %800 = vmatprep.subr.mxu0 0.0
          %801 = vmatpush1.msra.mxu0 %v771
          %802 = vmatprep.subr.mxu0 0.0
          %803 = vmatpush1.msra.mxu0 %v770
          %804 = vmatprep.subr.mxu0 0.0
          %805 = vmatpush1.msra.mxu0 %v769
          %806 = vmatprep.subr.mxu0 0.0
          %807 = vmatpush1.msra.mxu0 %v768
          %808 = vmatprep.subr.mxu0 0.0
          %809 = vmatpush1.msra.mxu0 %v767
          %810 = vmatprep.subr.mxu0 0.0
          %811 = vmatpush1.msra.mxu0 %v766
          %812 = vmatprep.subr.mxu0 0.0
          %813 = vmatpush1.msra.mxu0 %v765
          %814 = vmatprep.subr.mxu0 0.0
          %815 = vmatpush1.msra.mxu0 %v764
          %816 = vmatprep.subr.mxu0 0.0
          %817 = vmatpush1.msra.mxu0 %v763
          %818 = vmatprep.subr.mxu0 0.0
          %819 = vmatpush2.msra.mxu0 0.0
          %820 = vmatprep.subr.mxu0 0.0
          %821 = vmatpush2.msra.mxu0 0.0
          %822 = vmatprep.subr.mxu0 0.0
          %823 = vmatpush2.msra.mxu0 0.0
          %824 = vmatprep.subr.mxu0 0.0
          %825 = vmatpush2.msra.mxu0 0.0
          %826 = vmatprep.subr.mxu0 0.0
          %827 = vmatpush2.msra.mxu0 0.0
          %828 = vmatprep.subr.mxu0 0.0
          %829 = vmatpush2.msra.mxu0 0.0
          %830 = vmatprep.subr.mxu0 0.0
          %831 = vmatpush2.msra.mxu0 0.0
          %832 = vmatprep.subr.mxu0 0.0
          %833 = vmatpush2.msra.mxu0 0.0
          %834 = vmatprep.subr.mxu0 0.0
          %835 = vmatpush2.msra.mxu0 0.0
          %836 = vmatprep.subr.mxu0 0.0
          %837 = vmatpush2.msra.mxu0 0.0
          %838 = vmatprep.subr.mxu0 0.0
          %839 = vmatpush2.msra.mxu0 0.0
          %840 = vmatprep.subr.mxu0 0.0
          %841 = vmatpush2.msra.mxu0 0.0
          %842 = vmatprep.subr.mxu0 0.0
          %843 = vmatpush2.msra.mxu0 0.0
          %844 = vmatprep.subr.mxu0 0.0
          %845 = vmatpush2.msra.mxu0 0.0
          %846 = vmatprep.subr.mxu0 0.0
          %847 = vmatpush2.msra.mxu0 0.0
          %848 = vmatprep.subr.mxu0 0.0
          %849 = vmatpush2.msra.mxu0 0.0
          %850 = vmatprep.mubr.f32.mxu0 0.0
          %851 = vmatmul.mubr.f32.gmra.mxu0 %v747
          %v852 = vpop.f32.mrf.mxu0
          %v853 = vadd.f32 %v784, %v852
          %v854 = vpop.f32.mrf.mxu0
          %855 = vmatprep.mubr.f32.mxu0 0.0
          %856 = vmatmul.mubr.f32.gmra.mxu0 %v748
          %v857 = vpop.f32.mrf.mxu0
          %v858 = vadd.f32 %v784, %v857
          %v859 = vpop.f32.mrf.mxu0
          %860 = vmatprep.mubr.f32.mxu0 0.0
          %861 = vmatmul.mubr.f32.gmra.mxu0 %v749
          %v862 = vpop.f32.mrf.mxu0
          %v863 = vadd.f32 %v784, %v862
          %v864 = vpop.f32.mrf.mxu0
          %865 = vmatprep.mubr.f32.mxu0 0.0
          %866 = vmatmul.mubr.f32.gmra.mxu0 %v750
          %v867 = vpop.f32.mrf.mxu0
          %v868 = vadd.f32 %v784, %v867
          %v869 = vpop.f32.mrf.mxu0
          %870 = vmatprep.mubr.f32.mxu0 0.0
          %871 = vmatmul.mubr.f32.gmra.mxu0 %v751
          %v872 = vpop.f32.mrf.mxu0
          %v873 = vadd.f32 %v784, %v872
          %v874 = vpop.f32.mrf.mxu0
          %875 = vmatprep.mubr.f32.mxu0 0.0
          %876 = vmatmul.mubr.f32.gmra.mxu0 %v752
          %v877 = vpop.f32.mrf.mxu0
          %v878 = vadd.f32 %v784, %v877
          %v879 = vpop.f32.mrf.mxu0
          %880 = vmatprep.mubr.f32.mxu0 0.0
          %881 = vmatmul.mubr.f32.gmra.mxu0 %v753
          %v882 = vpop.f32.mrf.mxu0
          %v883 = vadd.f32 %v784, %v882
          %v884 = vpop.f32.mrf.mxu0
          %885 = vmatprep.mubr.f32.mxu0 0.0
          %886 = vmatmul.mubr.f32.gmra.mxu0 %v754
          %v887 = vpop.f32.mrf.mxu0
          %v888 = vadd.f32 %v784, %v887
          %v889 = vpop.f32.mrf.mxu0
          %890 = vmatprep.mubr.f32.mxu0 0.0
          %891 = vmatmul.mubr.f32.gmra.mxu0 %v755
          %v892 = vpop.f32.mrf.mxu0
          %v893 = vadd.f32 %v784, %v892
          %v894 = vpop.f32.mrf.mxu0
          %895 = vmatprep.mubr.f32.mxu0 0.0
          %896 = vmatmul.mubr.f32.gmra.mxu0 %v756
          %v897 = vpop.f32.mrf.mxu0
          %v898 = vadd.f32 %v784, %v897
          %v899 = vpop.f32.mrf.mxu0
          %900 = vmatprep.mubr.f32.mxu0 0.0
          %901 = vmatmul.mubr.f32.gmra.mxu0 %v757
          %v902 = vpop.f32.mrf.mxu0
          %v903 = vadd.f32 %v784, %v902
          %v904 = vpop.f32.mrf.mxu0
          %905 = vmatprep.mubr.f32.mxu0 0.0
          %906 = vmatmul.mubr.f32.gmra.mxu0 %v758
          %v907 = vpop.f32.mrf.mxu0
          %v908 = vadd.f32 %v784, %v907
          %v909 = vpop.f32.mrf.mxu0
          %910 = vmatprep.mubr.f32.mxu0 0.0
          %911 = vmatmul.mubr.f32.gmra.mxu0 %v759
          %v912 = vpop.f32.mrf.mxu0
          %v913 = vadd.f32 %v784, %v912
          %v914 = vpop.f32.mrf.mxu0
          %915 = vmatprep.mubr.f32.mxu0 0.0
          %916 = vmatmul.mubr.f32.gmra.mxu0 %v760
          %v917 = vpop.f32.mrf.mxu0
          %v918 = vadd.f32 %v784, %v917
          %v919 = vpop.f32.mrf.mxu0
          %920 = vmatprep.mubr.f32.mxu0 0.0
          %921 = vmatmul.mubr.f32.gmra.mxu0 %v761
          %v922 = vpop.f32.mrf.mxu0
          %v923 = vadd.f32 %v784, %v922
          %v924 = vpop.f32.mrf.mxu0
          %925 = vmatprep.mubr.f32.mxu0 0.0
          %926 = vmatmul.mubr.f32.gmra.mxu0 %v762
          %v927 = vpop.f32.mrf.mxu0
          %v928 = vadd.f32 %v784, %v927
          %v929 = vpop.f32.mrf.mxu0
          %930 = vdwg.mxu0
          %v931 = vtanh.pop %v853
          %v932 = vtanh.pop %v858
          %v933 = vtanh.pop %v863
          %v934 = vtanh.pop %v868
          %v935 = vtanh.pop %v873
          %v936 = vtanh.pop %v878
          %v937 = vtanh.pop %v883
          %v938 = vtanh.pop %v888
          %v939 = vtanh.pop %v893
          %v940 = vtanh.pop %v898
          %v941 = vtanh.pop %v903
          %v942 = vtanh.pop %v908
          %v943 = vtanh.pop %v913
          %v944 = vtanh.pop %v918
          %v945 = vtanh.pop %v923
          %v946 = vtanh.pop %v928
          %v947 = vld [vmem:[%s5] sm:$0x1]
          %v949 = vlaneseq
          %v950 = vshrl.u32 %v949, 7
          %v951 = vsub.s32 0, %v950
          %v952 = vrot.slane %v947, %v951
          %v954 = vmul.f32 %v931, %v952
          %v955 = vmul.f32 %v932, %v952
          %v956 = vmul.f32 %v933, %v952
          %v957 = vmul.f32 %v934, %v952
          %v958 = vmul.f32 %v935, %v952
          %v959 = vmul.f32 %v936, %v952
          %v960 = vmul.f32 %v937, %v952
          %v961 = vmul.f32 %v938, %v952
          %v962 = vmul.f32 %v939, %v952
          %v963 = vmul.f32 %v940, %v952
          %v964 = vmul.f32 %v941, %v952
          %v965 = vmul.f32 %v942, %v952
          %v966 = vmul.f32 %v943, %v952
          %v967 = vmul.f32 %v944, %v952
          %v968 = vmul.f32 %v945, %v952
          %v969 = vmul.f32 %v946, %v952
          %970 = vadd.xlane.f32.xlu0 %v954
          %v971 = vpop.xlane.xlu0 %970
          %972 = vadd.xlane.f32.xlu0 %v955
          %v973 = vpop.xlane.xlu0 %972
          %974 = vadd.xlane.f32.xlu0 %v956
          %v975 = vpop.xlane.xlu0 %974
          %976 = vadd.xlane.f32.xlu0 %v957
          %v977 = vpop.xlane.xlu0 %976
          %978 = vadd.xlane.f32.xlu0 %v958
          %v979 = vpop.xlane.xlu0 %978
          %980 = vadd.xlane.f32.xlu0 %v959
          %v981 = vpop.xlane.xlu0 %980
          %982 = vadd.xlane.f32.xlu0 %v960
          %v983 = vpop.xlane.xlu0 %982
          %984 = vadd.xlane.f32.xlu0 %v961
          %v985 = vpop.xlane.xlu0 %984
          %986 = vadd.xlane.f32.xlu0 %v962
          %v987 = vpop.xlane.xlu0 %986
          %988 = vadd.xlane.f32.xlu0 %v963
          %v989 = vpop.xlane.xlu0 %988
          %990 = vadd.xlane.f32.xlu0 %v964
          %v991 = vpop.xlane.xlu0 %990
          %992 = vadd.xlane.f32.xlu0 %v965
          %v993 = vpop.xlane.xlu0 %992
          %994 = vadd.xlane.f32.xlu0 %v966
          %v995 = vpop.xlane.xlu0 %994
          %996 = vadd.xlane.f32.xlu0 %v967
          %v997 = vpop.xlane.xlu0 %996
          %998 = vadd.xlane.f32.xlu0 %v968
          %v999 = vpop.xlane.xlu0 %998
          %1000 = vadd.xlane.f32.xlu0 %v969
          %v1001 = vpop.xlane.xlu0 %1000
          %v1002 = vld [vmem:[#allocation4] sm:$0xff]
          %v1003 = vld [vmem:[#allocation4 + $0x8] sm:$0xff]
          %v1004 = vld [vmem:[#allocation4 + $0x10] sm:$0xff]
          %v1005 = vld [vmem:[#allocation4 + $0x18] sm:$0xff]
          %v1006 = vld [vmem:[#allocation4 + $0x20] sm:$0xff]
          %v1007 = vld [vmem:[#allocation4 + $0x28] sm:$0xff]
          %v1008 = vld [vmem:[#allocation4 + $0x30] sm:$0xff]
          %v1009 = vld [vmem:[#allocation4 + $0x38] sm:$0xff]
          %v1010 = vld [vmem:[#allocation4 + $0x40] sm:$0xff]
          %v1011 = vld [vmem:[#allocation4 + $0x48] sm:$0xff]
          %v1012 = vld [vmem:[#allocation4 + $0x50] sm:$0xff]
          %v1013 = vld [vmem:[#allocation4 + $0x58] sm:$0xff]
          %v1014 = vld [vmem:[#allocation4 + $0x60] sm:$0xff]
          %v1015 = vld [vmem:[#allocation4 + $0x68] sm:$0xff]
          %v1016 = vld [vmem:[#allocation4 + $0x70] sm:$0xff]
          %v1017 = vld [vmem:[#allocation4 + $0x78] sm:$0xff]
          %v1018 = vmax.f32 %v1002, %v971
          %v1019 = vmax.f32 %v1003, %v973
          %v1020 = vmax.f32 %v1004, %v975
          %v1021 = vmax.f32 %v1005, %v977
          %v1022 = vmax.f32 %v1006, %v979
          %v1023 = vmax.f32 %v1007, %v981
          %v1024 = vmax.f32 %v1008, %v983
          %v1025 = vmax.f32 %v1009, %v985
          %v1026 = vmax.f32 %v1010, %v987
          %v1027 = vmax.f32 %v1011, %v989
          %v1028 = vmax.f32 %v1012, %v991
          %v1029 = vmax.f32 %v1013, %v993
          %v1030 = vmax.f32 %v1014, %v995
          %v1031 = vmax.f32 %v1015, %v997
          %v1032 = vmax.f32 %v1016, %v999
          %v1033 = vmax.f32 %v1017, %v1001
          %v1034 = vsub.f32 %v1002, %v1018
          %v1035 = vsub.f32 %v1003, %v1019
          %v1036 = vsub.f32 %v1004, %v1020
          %v1037 = vsub.f32 %v1005, %v1021
          %v1038 = vsub.f32 %v1006, %v1022
          %v1039 = vsub.f32 %v1007, %v1023
          %v1040 = vsub.f32 %v1008, %v1024
          %v1041 = vsub.f32 %v1009, %v1025
          %v1042 = vsub.f32 %v1010, %v1026
          %v1043 = vsub.f32 %v1011, %v1027
          %v1044 = vsub.f32 %v1012, %v1028
          %v1045 = vsub.f32 %v1013, %v1029
          %v1046 = vsub.f32 %v1014, %v1030
          %v1047 = vsub.f32 %v1015, %v1031
          %v1048 = vsub.f32 %v1016, %v1032
          %v1049 = vsub.f32 %v1017, %v1033
          %v1050 = vmul.f32 %v1034, 1.442695
          %v1051 = vpow.pop %v1050
          %v1052 = vmul.f32 %v1035, 1.442695
          %v1053 = vpow.pop %v1052
          %v1054 = vmul.f32 %v1036, 1.442695
          %v1055 = vpow.pop %v1054
          %v1056 = vmul.f32 %v1037, 1.442695
          %v1057 = vpow.pop %v1056
          %v1058 = vmul.f32 %v1038, 1.442695
          %v1059 = vpow.pop %v1058
          %v1060 = vmul.f32 %v1039, 1.442695
          %v1061 = vpow.pop %v1060
          %v1062 = vmul.f32 %v1040, 1.442695
          %v1063 = vpow.pop %v1062
          %v1064 = vmul.f32 %v1041, 1.442695
          %v1065 = vpow.pop %v1064
          %v1066 = vmul.f32 %v1042, 1.442695
          %v1067 = vpow.pop %v1066
          %v1068 = vmul.f32 %v1043, 1.442695
          %v1069 = vpow.pop %v1068
          %v1070 = vmul.f32 %v1044, 1.442695
          %v1071 = vpow.pop %v1070
          %v1072 = vmul.f32 %v1045, 1.442695
          %v1073 = vpow.pop %v1072
          %v1074 = vmul.f32 %v1046, 1.442695
          %v1075 = vpow.pop %v1074
          %v1076 = vmul.f32 %v1047, 1.442695
          %v1077 = vpow.pop %v1076
          %v1078 = vmul.f32 %v1048, 1.442695
          %v1079 = vpow.pop %v1078
          %v1080 = vmul.f32 %v1049, 1.442695
          %v1081 = vpow.pop %v1080
          %v1082 = vsub.f32 %v971, %v1018
          %v1083 = vsub.f32 %v973, %v1019
          %v1084 = vsub.f32 %v975, %v1020
          %v1085 = vsub.f32 %v977, %v1021
          %v1086 = vsub.f32 %v979, %v1022
          %v1087 = vsub.f32 %v981, %v1023
          %v1088 = vsub.f32 %v983, %v1024
          %v1089 = vsub.f32 %v985, %v1025
          %v1090 = vsub.f32 %v987, %v1026
          %v1091 = vsub.f32 %v989, %v1027
          %v1092 = vsub.f32 %v991, %v1028
          %v1093 = vsub.f32 %v993, %v1029
          %v1094 = vsub.f32 %v995, %v1030
          %v1095 = vsub.f32 %v997, %v1031
          %v1096 = vsub.f32 %v999, %v1032
          %v1097 = vsub.f32 %v1001, %v1033
          %v1098 = vmul.f32 %v1082, 1.442695
          %v1099 = vpow.pop %v1098
          %v1100 = vmul.f32 %v1083, 1.442695
          %v1101 = vpow.pop %v1100
          %v1102 = vmul.f32 %v1084, 1.442695
          %v1103 = vpow.pop %v1102
          %v1104 = vmul.f32 %v1085, 1.442695
          %v1105 = vpow.pop %v1104
          %v1106 = vmul.f32 %v1086, 1.442695
          %v1107 = vpow.pop %v1106
          %v1108 = vmul.f32 %v1087, 1.442695
          %v1109 = vpow.pop %v1108
          %v1110 = vmul.f32 %v1088, 1.442695
          %v1111 = vpow.pop %v1110
          %v1112 = vmul.f32 %v1089, 1.442695
          %v1113 = vpow.pop %v1112
          %v1114 = vmul.f32 %v1090, 1.442695
          %v1115 = vpow.pop %v1114
          %v1116 = vmul.f32 %v1091, 1.442695
          %v1117 = vpow.pop %v1116
          %v1118 = vmul.f32 %v1092, 1.442695
          %v1119 = vpow.pop %v1118
          %v1120 = vmul.f32 %v1093, 1.442695
          %v1121 = vpow.pop %v1120
          %v1122 = vmul.f32 %v1094, 1.442695
          %v1123 = vpow.pop %v1122
          %v1124 = vmul.f32 %v1095, 1.442695
          %v1125 = vpow.pop %v1124
          %v1126 = vmul.f32 %v1096, 1.442695
          %v1127 = vpow.pop %v1126
          %v1128 = vmul.f32 %v1097, 1.442695
          %v1129 = vpow.pop %v1128
          %v1130 = vld [vmem:[#allocation5] sm:$0xff]
          %v1131 = vld [vmem:[#allocation5 + $0x8] sm:$0xff]
          %v1132 = vld [vmem:[#allocation5 + $0x10] sm:$0xff]
          %v1133 = vld [vmem:[#allocation5 + $0x18] sm:$0xff]
          %v1134 = vld [vmem:[#allocation5 + $0x20] sm:$0xff]
          %v1135 = vld [vmem:[#allocation5 + $0x28] sm:$0xff]
          %v1136 = vld [vmem:[#allocation5 + $0x30] sm:$0xff]
          %v1137 = vld [vmem:[#allocation5 + $0x38] sm:$0xff]
          %v1138 = vld [vmem:[#allocation5 + $0x40] sm:$0xff]
          %v1139 = vld [vmem:[#allocation5 + $0x48] sm:$0xff]
          %v1140 = vld [vmem:[#allocation5 + $0x50] sm:$0xff]
          %v1141 = vld [vmem:[#allocation5 + $0x58] sm:$0xff]
          %v1142 = vld [vmem:[#allocation5 + $0x60] sm:$0xff]
          %v1143 = vld [vmem:[#allocation5 + $0x68] sm:$0xff]
          %v1144 = vld [vmem:[#allocation5 + $0x70] sm:$0xff]
          %v1145 = vld [vmem:[#allocation5 + $0x78] sm:$0xff]
          %v1146 = vmul.f32 %v1130, %v1051
          %v1147 = vmul.f32 %v1131, %v1053
          %v1148 = vmul.f32 %v1132, %v1055
          %v1149 = vmul.f32 %v1133, %v1057
          %v1150 = vmul.f32 %v1134, %v1059
          %v1151 = vmul.f32 %v1135, %v1061
          %v1152 = vmul.f32 %v1136, %v1063
          %v1153 = vmul.f32 %v1137, %v1065
          %v1154 = vmul.f32 %v1138, %v1067
          %v1155 = vmul.f32 %v1139, %v1069
          %v1156 = vmul.f32 %v1140, %v1071
          %v1157 = vmul.f32 %v1141, %v1073
          %v1158 = vmul.f32 %v1142, %v1075
          %v1159 = vmul.f32 %v1143, %v1077
          %v1160 = vmul.f32 %v1144, %v1079
          %v1161 = vmul.f32 %v1145, %v1081
          %v1162 = vadd.f32 %v1146, %v1099
          %v1163 = vadd.f32 %v1147, %v1101
          %v1164 = vadd.f32 %v1148, %v1103
          %v1165 = vadd.f32 %v1149, %v1105
          %v1166 = vadd.f32 %v1150, %v1107
          %v1167 = vadd.f32 %v1151, %v1109
          %v1168 = vadd.f32 %v1152, %v1111
          %v1169 = vadd.f32 %v1153, %v1113
          %v1170 = vadd.f32 %v1154, %v1115
          %v1171 = vadd.f32 %v1155, %v1117
          %v1172 = vadd.f32 %v1156, %v1119
          %v1173 = vadd.f32 %v1157, %v1121
          %v1174 = vadd.f32 %v1158, %v1123
          %v1175 = vadd.f32 %v1159, %v1125
          %v1176 = vadd.f32 %v1160, %v1127
          %v1177 = vadd.f32 %v1161, %v1129
          %vm1178 = vcmask 7168
          %1179 = vst.msk [vmem:[#allocation5] sm:$0xff] %vm1178, %v1162
          %1180 = vst.msk [vmem:[#allocation5 + $0x8] sm:$0xff] %vm1178, %v1163
          %1181 = vst.msk [vmem:[#allocation5 + $0x10] sm:$0xff] %vm1178, %v1164
          %1182 = vst.msk [vmem:[#allocation5 + $0x18] sm:$0xff] %vm1178, %v1165
          %1183 = vst.msk [vmem:[#allocation5 + $0x20] sm:$0xff] %vm1178, %v1166
          %1184 = vst.msk [vmem:[#allocation5 + $0x28] sm:$0xff] %vm1178, %v1167
          %1185 = vst.msk [vmem:[#allocation5 + $0x30] sm:$0xff] %vm1178, %v1168
          %1186 = vst.msk [vmem:[#allocation5 + $0x38] sm:$0xff] %vm1178, %v1169
          %1187 = vst.msk [vmem:[#allocation5 + $0x40] sm:$0xff] %vm1178, %v1170
          %1188 = vst.msk [vmem:[#allocation5 + $0x48] sm:$0xff] %vm1178, %v1171
          %1189 = vst.msk [vmem:[#allocation5 + $0x50] sm:$0xff] %vm1178, %v1172
          %1190 = vst.msk [vmem:[#allocation5 + $0x58] sm:$0xff] %vm1178, %v1173
          %1191 = vst.msk [vmem:[#allocation5 + $0x60] sm:$0xff] %vm1178, %v1174
          %1192 = vst.msk [vmem:[#allocation5 + $0x68] sm:$0xff] %vm1178, %v1175
          %1193 = vst.msk [vmem:[#allocation5 + $0x70] sm:$0xff] %vm1178, %v1176
          %1194 = vst.msk [vmem:[#allocation5 + $0x78] sm:$0xff] %vm1178, %v1177
          %v1195 = vld [vmem:[#allocation3] sm:$0xff]
          %v1196 = vld [vmem:[#allocation3 + $0x8] sm:$0xff]
          %v1197 = vld [vmem:[#allocation3 + $0x10] sm:$0xff]
          %v1198 = vld [vmem:[#allocation3 + $0x18] sm:$0xff]
          %v1199 = vld [vmem:[#allocation3 + $0x20] sm:$0xff]
          %v1200 = vld [vmem:[#allocation3 + $0x28] sm:$0xff]
          %v1201 = vld [vmem:[#allocation3 + $0x30] sm:$0xff]
          %v1202 = vld [vmem:[#allocation3 + $0x38] sm:$0xff]
          %v1203 = vld [vmem:[#allocation3 + $0x40] sm:$0xff]
          %v1204 = vld [vmem:[#allocation3 + $0x48] sm:$0xff]
          %v1205 = vld [vmem:[#allocation3 + $0x50] sm:$0xff]
          %v1206 = vld [vmem:[#allocation3 + $0x58] sm:$0xff]
          %v1207 = vld [vmem:[#allocation3 + $0x60] sm:$0xff]
          %v1208 = vld [vmem:[#allocation3 + $0x68] sm:$0xff]
          %v1209 = vld [vmem:[#allocation3 + $0x70] sm:$0xff]
          %v1210 = vld [vmem:[#allocation3 + $0x78] sm:$0xff]
          %1212 = vset.pattern.permute.xlu0 0
          %1213 = vperm.xlu0 %1212, %v1051
          %v1214 = vpop.permute.xlu0 %1213
          %1217 = vset.pattern.permute.xlu0 0
          %1218 = vperm.xlu0 %1217, %v1053
          %v1219 = vpop.permute.xlu0 %1218
          %1222 = vset.pattern.permute.xlu0 0
          %1223 = vperm.xlu0 %1222, %v1055
          %v1224 = vpop.permute.xlu0 %1223
          %1227 = vset.pattern.permute.xlu0 0
          %1228 = vperm.xlu0 %1227, %v1057
          %v1229 = vpop.permute.xlu0 %1228
          %1232 = vset.pattern.permute.xlu0 0
          %1233 = vperm.xlu0 %1232, %v1059
          %v1234 = vpop.permute.xlu0 %1233
          %1237 = vset.pattern.permute.xlu0 0
          %1238 = vperm.xlu0 %1237, %v1061
          %v1239 = vpop.permute.xlu0 %1238
          %1242 = vset.pattern.permute.xlu0 0
          %1243 = vperm.xlu0 %1242, %v1063
          %v1244 = vpop.permute.xlu0 %1243
          %1247 = vset.pattern.permute.xlu0 0
          %1248 = vperm.xlu0 %1247, %v1065
          %v1249 = vpop.permute.xlu0 %1248
          %1252 = vset.pattern.permute.xlu0 0
          %1253 = vperm.xlu0 %1252, %v1067
          %v1254 = vpop.permute.xlu0 %1253
          %1257 = vset.pattern.permute.xlu0 0
          %1258 = vperm.xlu0 %1257, %v1069
          %v1259 = vpop.permute.xlu0 %1258
          %1262 = vset.pattern.permute.xlu0 0
          %1263 = vperm.xlu0 %1262, %v1071
          %v1264 = vpop.permute.xlu0 %1263
          %1267 = vset.pattern.permute.xlu0 0
          %1268 = vperm.xlu0 %1267, %v1073
          %v1269 = vpop.permute.xlu0 %1268
          %1272 = vset.pattern.permute.xlu0 0
          %1273 = vperm.xlu0 %1272, %v1075
          %v1274 = vpop.permute.xlu0 %1273
          %1277 = vset.pattern.permute.xlu0 0
          %1278 = vperm.xlu0 %1277, %v1077
          %v1279 = vpop.permute.xlu0 %1278
          %1282 = vset.pattern.permute.xlu0 0
          %1283 = vperm.xlu0 %1282, %v1079
          %v1284 = vpop.permute.xlu0 %1283
          %1287 = vset.pattern.permute.xlu0 0
          %1288 = vperm.xlu0 %1287, %v1081
          %v1289 = vpop.permute.xlu0 %1288
          %v1291 = vmul.f32 %v1195, %v1214
          %v1292 = vmul.f32 %v1196, %v1219
          %v1293 = vmul.f32 %v1197, %v1224
          %v1294 = vmul.f32 %v1198, %v1229
          %v1295 = vmul.f32 %v1199, %v1234
          %v1296 = vmul.f32 %v1200, %v1239
          %v1297 = vmul.f32 %v1201, %v1244
          %v1298 = vmul.f32 %v1202, %v1249
          %v1299 = vmul.f32 %v1203, %v1254
          %v1300 = vmul.f32 %v1204, %v1259
          %v1301 = vmul.f32 %v1205, %v1264
          %v1302 = vmul.f32 %v1206, %v1269
          %v1303 = vmul.f32 %v1207, %v1274
          %v1304 = vmul.f32 %v1208, %v1279
          %v1305 = vmul.f32 %v1209, %v1284
          %v1306 = vmul.f32 %v1210, %v1289
          %1308 = vset.pattern.permute.xlu0 0
          %1309 = vperm.xlu0 %1308, %v1099
          %v1310 = vpop.permute.xlu0 %1309
          %1313 = vset.pattern.permute.xlu0 0
          %1314 = vperm.xlu0 %1313, %v1101
          %v1315 = vpop.permute.xlu0 %1314
          %1318 = vset.pattern.permute.xlu0 0
          %1319 = vperm.xlu0 %1318, %v1103
          %v1320 = vpop.permute.xlu0 %1319
          %1323 = vset.pattern.permute.xlu0 0
          %1324 = vperm.xlu0 %1323, %v1105
          %v1325 = vpop.permute.xlu0 %1324
          %1328 = vset.pattern.permute.xlu0 0
          %1329 = vperm.xlu0 %1328, %v1107
          %v1330 = vpop.permute.xlu0 %1329
          %1333 = vset.pattern.permute.xlu0 0
          %1334 = vperm.xlu0 %1333, %v1109
          %v1335 = vpop.permute.xlu0 %1334
          %1338 = vset.pattern.permute.xlu0 0
          %1339 = vperm.xlu0 %1338, %v1111
          %v1340 = vpop.permute.xlu0 %1339
          %1343 = vset.pattern.permute.xlu0 0
          %1344 = vperm.xlu0 %1343, %v1113
          %v1345 = vpop.permute.xlu0 %1344
          %1348 = vset.pattern.permute.xlu0 0
          %1349 = vperm.xlu0 %1348, %v1115
          %v1350 = vpop.permute.xlu0 %1349
          %1353 = vset.pattern.permute.xlu0 0
          %1354 = vperm.xlu0 %1353, %v1117
          %v1355 = vpop.permute.xlu0 %1354
          %1358 = vset.pattern.permute.xlu0 0
          %1359 = vperm.xlu0 %1358, %v1119
          %v1360 = vpop.permute.xlu0 %1359
          %1363 = vset.pattern.permute.xlu0 0
          %1364 = vperm.xlu0 %1363, %v1121
          %v1365 = vpop.permute.xlu0 %1364
          %1368 = vset.pattern.permute.xlu0 0
          %1369 = vperm.xlu0 %1368, %v1123
          %v1370 = vpop.permute.xlu0 %1369
          %1373 = vset.pattern.permute.xlu0 0
          %1374 = vperm.xlu0 %1373, %v1125
          %v1375 = vpop.permute.xlu0 %1374
          %1378 = vset.pattern.permute.xlu0 0
          %1379 = vperm.xlu0 %1378, %v1127
          %v1380 = vpop.permute.xlu0 %1379
          %1383 = vset.pattern.permute.xlu0 0
          %1384 = vperm.xlu0 %1383, %v1129
          %v1385 = vpop.permute.xlu0 %1384
          %v1387 = vmul.f32 %v1310, %v747
          %v1388 = vmul.f32 %v1315, %v748
          %v1389 = vmul.f32 %v1320, %v749
          %v1390 = vmul.f32 %v1325, %v750
          %v1391 = vmul.f32 %v1330, %v751
          %v1392 = vmul.f32 %v1335, %v752
          %v1393 = vmul.f32 %v1340, %v753
          %v1394 = vmul.f32 %v1345, %v754
          %v1395 = vmul.f32 %v1350, %v755
          %v1396 = vmul.f32 %v1355, %v756
          %v1397 = vmul.f32 %v1360, %v757
          %v1398 = vmul.f32 %v1365, %v758
          %v1399 = vmul.f32 %v1370, %v759
          %v1400 = vmul.f32 %v1375, %v760
          %v1401 = vmul.f32 %v1380, %v761
          %v1402 = vmul.f32 %v1385, %v762
          %v1403 = vadd.f32 %v1291, %v1387
          %v1404 = vadd.f32 %v1292, %v1388
          %v1405 = vadd.f32 %v1293, %v1389
          %v1406 = vadd.f32 %v1294, %v1390
          %v1407 = vadd.f32 %v1295, %v1391
          %v1408 = vadd.f32 %v1296, %v1392
          %v1409 = vadd.f32 %v1297, %v1393
          %v1410 = vadd.f32 %v1298, %v1394
          %v1411 = vadd.f32 %v1299, %v1395
          %v1412 = vadd.f32 %v1300, %v1396
          %v1413 = vadd.f32 %v1301, %v1397
          %v1414 = vadd.f32 %v1302, %v1398
          %v1415 = vadd.f32 %v1303, %v1399
          %v1416 = vadd.f32 %v1304, %v1400
          %v1417 = vadd.f32 %v1305, %v1401
          %v1418 = vadd.f32 %v1306, %v1402
          %1419 = vst [vmem:[#allocation3] sm:$0xff] %v1403
          %1420 = vst [vmem:[#allocation3 + $0x8] sm:$0xff] %v1404
          %1421 = vst [vmem:[#allocation3 + $0x10] sm:$0xff] %v1405
          %1422 = vst [vmem:[#allocation3 + $0x18] sm:$0xff] %v1406
          %1423 = vst [vmem:[#allocation3 + $0x20] sm:$0xff] %v1407
          %1424 = vst [vmem:[#allocation3 + $0x28] sm:$0xff] %v1408
          %1425 = vst [vmem:[#allocation3 + $0x30] sm:$0xff] %v1409
          %1426 = vst [vmem:[#allocation3 + $0x38] sm:$0xff] %v1410
          %1427 = vst [vmem:[#allocation3 + $0x40] sm:$0xff] %v1411
          %1428 = vst [vmem:[#allocation3 + $0x48] sm:$0xff] %v1412
          %1429 = vst [vmem:[#allocation3 + $0x50] sm:$0xff] %v1413
          %1430 = vst [vmem:[#allocation3 + $0x58] sm:$0xff] %v1414
          %1431 = vst [vmem:[#allocation3 + $0x60] sm:$0xff] %v1415
          %1432 = vst [vmem:[#allocation3 + $0x68] sm:$0xff] %v1416
          %1433 = vst [vmem:[#allocation3 + $0x70] sm:$0xff] %v1417
          %1434 = vst [vmem:[#allocation3 + $0x78] sm:$0xff] %v1418
          %1435 = vst.msk [vmem:[#allocation4] sm:$0xff] %vm1178, %v1018
          %1436 = vst.msk [vmem:[#allocation4 + $0x8] sm:$0xff] %vm1178, %v1019
          %1437 = vst.msk [vmem:[#allocation4 + $0x10] sm:$0xff] %vm1178, %v1020
          %1438 = vst.msk [vmem:[#allocation4 + $0x18] sm:$0xff] %vm1178, %v1021
          %1439 = vst.msk [vmem:[#allocation4 + $0x20] sm:$0xff] %vm1178, %v1022
          %1440 = vst.msk [vmem:[#allocation4 + $0x28] sm:$0xff] %vm1178, %v1023
          %1441 = vst.msk [vmem:[#allocation4 + $0x30] sm:$0xff] %vm1178, %v1024
          %1442 = vst.msk [vmem:[#allocation4 + $0x38] sm:$0xff] %vm1178, %v1025
          %1443 = vst.msk [vmem:[#allocation4 + $0x40] sm:$0xff] %vm1178, %v1026
          %1444 = vst.msk [vmem:[#allocation4 + $0x48] sm:$0xff] %vm1178, %v1027
          %1445 = vst.msk [vmem:[#allocation4 + $0x50] sm:$0xff] %vm1178, %v1028
          %1446 = vst.msk [vmem:[#allocation4 + $0x58] sm:$0xff] %vm1178, %v1029
          %1447 = vst.msk [vmem:[#allocation4 + $0x60] sm:$0xff] %vm1178, %v1030
          %1448 = vst.msk [vmem:[#allocation4 + $0x68] sm:$0xff] %vm1178, %v1031
          %1449 = vst.msk [vmem:[#allocation4 + $0x70] sm:$0xff] %vm1178, %v1032
          %1450 = vst.msk [vmem:[#allocation4 + $0x78] sm:$0xff] %vm1178, %v1033
        $region68: #{tpu_custom_call.1} parent=43 // pred_fallthru
          _
        %p1451 = scmp.eq.s32.totalorder %s32, 2
        %p1452 = pnand %p1451, %p720
        %p1453 = pneg %p1452
        // Predicated region
        $region69: #{tpu_custom_call.1} parent=43 // pred_check
          _
        $region70: #{tpu_custom_call.1} parent=43 // pred_check_branch
          %1455 = sbr.rel (%p1452) target = $region72
        $region71: #{tpu_custom_call.1} parent=43 // pred_region
          %v1456 = vld [vmem:[#allocation3] sm:$0xff]
          %v1457 = vld [vmem:[#allocation3 + $0x8] sm:$0xff]
          %v1458 = vld [vmem:[#allocation3 + $0x10] sm:$0xff]
          %v1459 = vld [vmem:[#allocation3 + $0x18] sm:$0xff]
          %v1460 = vld [vmem:[#allocation3 + $0x20] sm:$0xff]
          %v1461 = vld [vmem:[#allocation3 + $0x28] sm:$0xff]
          %v1462 = vld [vmem:[#allocation3 + $0x30] sm:$0xff]
          %v1463 = vld [vmem:[#allocation3 + $0x38] sm:$0xff]
          %v1464 = vld [vmem:[#allocation3 + $0x40] sm:$0xff]
          %v1465 = vld [vmem:[#allocation3 + $0x48] sm:$0xff]
          %v1466 = vld [vmem:[#allocation3 + $0x50] sm:$0xff]
          %v1467 = vld [vmem:[#allocation3 + $0x58] sm:$0xff]
          %v1468 = vld [vmem:[#allocation3 + $0x60] sm:$0xff]
          %v1469 = vld [vmem:[#allocation3 + $0x68] sm:$0xff]
          %v1470 = vld [vmem:[#allocation3 + $0x70] sm:$0xff]
          %v1471 = vld [vmem:[#allocation3 + $0x78] sm:$0xff]
          %v1472 = vld [vmem:[#allocation5] sm:$0xff]
          %v1473 = vld [vmem:[#allocation5 + $0x8] sm:$0xff]
          %v1474 = vld [vmem:[#allocation5 + $0x10] sm:$0xff]
          %v1475 = vld [vmem:[#allocation5 + $0x18] sm:$0xff]
          %v1476 = vld [vmem:[#allocation5 + $0x20] sm:$0xff]
          %v1477 = vld [vmem:[#allocation5 + $0x28] sm:$0xff]
          %v1478 = vld [vmem:[#allocation5 + $0x30] sm:$0xff]
          %v1479 = vld [vmem:[#allocation5 + $0x38] sm:$0xff]
          %v1480 = vld [vmem:[#allocation5 + $0x40] sm:$0xff]
          %v1481 = vld [vmem:[#allocation5 + $0x48] sm:$0xff]
          %v1482 = vld [vmem:[#allocation5 + $0x50] sm:$0xff]
          %v1483 = vld [vmem:[#allocation5 + $0x58] sm:$0xff]
          %v1484 = vld [vmem:[#allocation5 + $0x60] sm:$0xff]
          %v1485 = vld [vmem:[#allocation5 + $0x68] sm:$0xff]
          %v1486 = vld [vmem:[#allocation5 + $0x70] sm:$0xff]
          %v1487 = vld [vmem:[#allocation5 + $0x78] sm:$0xff]
          %v1488 = vrcp.pop %v1472
          %v1489 = vrcp.pop %v1473
          %v1490 = vrcp.pop %v1474
          %v1491 = vrcp.pop %v1475
          %v1492 = vrcp.pop %v1476
          %v1493 = vrcp.pop %v1477
          %v1494 = vrcp.pop %v1478
          %v1495 = vrcp.pop %v1479
          %v1496 = vrcp.pop %v1480
          %v1497 = vrcp.pop %v1481
          %v1498 = vrcp.pop %v1482
          %v1499 = vrcp.pop %v1483
          %v1500 = vrcp.pop %v1484
          %v1501 = vrcp.pop %v1485
          %v1502 = vrcp.pop %v1486
          %v1503 = vrcp.pop %v1487
          %1505 = vset.pattern.permute.xlu0 0
          %1506 = vperm.xlu0 %1505, %v1488
          %v1507 = vpop.permute.xlu0 %1506
          %1510 = vset.pattern.permute.xlu0 0
          %1511 = vperm.xlu0 %1510, %v1489
          %v1512 = vpop.permute.xlu0 %1511
          %1515 = vset.pattern.permute.xlu0 0
          %1516 = vperm.xlu0 %1515, %v1490
          %v1517 = vpop.permute.xlu0 %1516
          %1520 = vset.pattern.permute.xlu0 0
          %1521 = vperm.xlu0 %1520, %v1491
          %v1522 = vpop.permute.xlu0 %1521
          %1525 = vset.pattern.permute.xlu0 0
          %1526 = vperm.xlu0 %1525, %v1492
          %v1527 = vpop.permute.xlu0 %1526
          %1530 = vset.pattern.permute.xlu0 0
          %1531 = vperm.xlu0 %1530, %v1493
          %v1532 = vpop.permute.xlu0 %1531
          %1535 = vset.pattern.permute.xlu0 0
          %1536 = vperm.xlu0 %1535, %v1494
          %v1537 = vpop.permute.xlu0 %1536
          %1540 = vset.pattern.permute.xlu0 0
          %1541 = vperm.xlu0 %1540, %v1495
          %v1542 = vpop.permute.xlu0 %1541
          %1545 = vset.pattern.permute.xlu0 0
          %1546 = vperm.xlu0 %1545, %v1496
          %v1547 = vpop.permute.xlu0 %1546
          %1550 = vset.pattern.permute.xlu0 0
          %1551 = vperm.xlu0 %1550, %v1497
          %v1552 = vpop.permute.xlu0 %1551
          %1555 = vset.pattern.permute.xlu0 0
          %1556 = vperm.xlu0 %1555, %v1498
          %v1557 = vpop.permute.xlu0 %1556
          %1560 = vset.pattern.permute.xlu0 0
          %1561 = vperm.xlu0 %1560, %v1499
          %v1562 = vpop.permute.xlu0 %1561
          %1565 = vset.pattern.permute.xlu0 0
          %1566 = vperm.xlu0 %1565, %v1500
          %v1567 = vpop.permute.xlu0 %1566
          %1570 = vset.pattern.permute.xlu0 0
          %1571 = vperm.xlu0 %1570, %v1501
          %v1572 = vpop.permute.xlu0 %1571
          %1575 = vset.pattern.permute.xlu0 0
          %1576 = vperm.xlu0 %1575, %v1502
          %v1577 = vpop.permute.xlu0 %1576
          %1580 = vset.pattern.permute.xlu0 0
          %1581 = vperm.xlu0 %1580, %v1503
          %v1582 = vpop.permute.xlu0 %1581
          %v1584 = vmul.f32 %v1456, %v1507
          %v1585 = vmul.f32 %v1457, %v1512
          %v1586 = vmul.f32 %v1458, %v1517
          %v1587 = vmul.f32 %v1459, %v1522
          %v1588 = vmul.f32 %v1460, %v1527
          %v1589 = vmul.f32 %v1461, %v1532
          %v1590 = vmul.f32 %v1462, %v1537
          %v1591 = vmul.f32 %v1463, %v1542
          %v1592 = vmul.f32 %v1464, %v1547
          %v1593 = vmul.f32 %v1465, %v1552
          %v1594 = vmul.f32 %v1466, %v1557
          %v1595 = vmul.f32 %v1467, %v1562
          %v1596 = vmul.f32 %v1468, %v1567
          %v1597 = vmul.f32 %v1469, %v1572
          %v1598 = vmul.f32 %v1470, %v1577
          %v1599 = vmul.f32 %v1471, %v1582
          %1600 = vst [vmem:[%s365] sm:$0xff] %v1584
          %1601 = vst [vmem:[%s365 + $0x8] sm:$0xff] %v1585
          %1602 = vst [vmem:[%s365 + $0x10] sm:$0xff] %v1586
          %1603 = vst [vmem:[%s365 + $0x18] sm:$0xff] %v1587
          %1604 = vst [vmem:[%s365 + $0x20] sm:$0xff] %v1588
          %1605 = vst [vmem:[%s365 + $0x28] sm:$0xff] %v1589
          %1606 = vst [vmem:[%s365 + $0x30] sm:$0xff] %v1590
          %1607 = vst [vmem:[%s365 + $0x38] sm:$0xff] %v1591
          %1608 = vst [vmem:[%s365 + $0x40] sm:$0xff] %v1592
          %1609 = vst [vmem:[%s365 + $0x48] sm:$0xff] %v1593
          %1610 = vst [vmem:[%s365 + $0x50] sm:$0xff] %v1594
          %1611 = vst [vmem:[%s365 + $0x58] sm:$0xff] %v1595
          %1612 = vst [vmem:[%s365 + $0x60] sm:$0xff] %v1596
          %1613 = vst [vmem:[%s365 + $0x68] sm:$0xff] %v1597
          %1614 = vst [vmem:[%s365 + $0x70] sm:$0xff] %v1598
          %1615 = vst [vmem:[%s365 + $0x78] sm:$0xff] %v1599
        $region72: #{tpu_custom_call.1} parent=43 // pred_fallthru
          _
        %s1616 = sand.u32 %s200, 1
        %s1617 = scalar_lea.sflag [#allocation8], %s1616
        %s1618 = sand.u32 %s200, 1
        %s1619 = smul.addr %s1618, 128
        %s1620 = scalar_lea.vmem [#allocation12], %s1619
        // Predicated region
        $region73: #{tpu_custom_call.1} parent=43 // pred_check
          %p1621 = pneg %p210
        $region74: #{tpu_custom_call.1} parent=43 // pred_check_branch
          %1623 = sbr.rel (%p1621) target = $region76
        $region75: #{tpu_custom_call.1} parent=43 // pred_region
          %s1624 = smul.u32 16, %s31
          %s1626 = ssub.s32 2048, 2048
          %1627 = vsyncadd %s1617, %s1626
          %s1628 = smul.addr %s1624, 128
          %s1629 = scalar_lea.hbm %s6, %s1628
          %s1630 = sshll.u32 %s1620, 4
          %s1631 = int_to_ptr.vmem [resolvable:$true] %s1630
          %1636 = dma.vmem_to_hbm [thread:$0]  %s1631, 2048, %s1629, %s1617, 128, 128, 8
        $region76: #{tpu_custom_call.1} parent=43 // pred_fallthru
          _
      $region44: #{tpu_custom_call.1} parent=5 // pred_fallthru
        _
      %p1637 = scmp.le.s32.totalorder 2, %s21
      // Predicated region
      $region77: #{tpu_custom_call.1} parent=5 // pred_check
        %p1638 = pneg %p1637
      $region78: #{tpu_custom_call.1} parent=5 // pred_check_branch
        %1640 = sbr.rel (%p1638) target = $region80
      $region79: #{tpu_custom_call.1} parent=5 // pred_region
        %s1641 = ssub.s32 %s21, 2
        // Predicated region
        $region81: #{tpu_custom_call.1} parent=79 // pred_check
          %p1642 = pneg %p216
        $region82: #{tpu_custom_call.1} parent=79 // pred_check_branch
          %1644 = sbr.rel (%p1642) target = $region84
        $region83: #{tpu_custom_call.1} parent=79 // pred_region
          %s1645 = sand.u32 %s201, 1
          %s1646 = scalar_lea.sflag [#allocation8], %s1645
          %s1647 = sand.u32 %s201, 1
          %s1648 = smul.addr %s1647, 128
          %s1649 = scalar_lea.vmem [#allocation12], %s1648
          %1650 = dma.done %s1646, 2048
        $region84: #{tpu_custom_call.1} parent=79 // pred_fallthru
          _
      $region80: #{tpu_custom_call.1} parent=5 // pred_fallthru
        _
    $region6: #{tpu_custom_call.1} parent=1 // loop_footer
      %s25 = sadd.s32 1, %s21
    $region7: #{tpu_custom_call.1} parent=1 // loop_footer_branch
      %20 = sbr.rel target = $region3
    $region8: #{tpu_custom_call.1} parent=1 // loop_exit
      _
    %1651 = vsyncpa [#allocation7], 1
    %s1652 = scalar_lea.sflag [#allocation7], 1
    %1653 = vsyncpa %s1652, 1
    %1654 = vsyncpa [#allocation10], 1
    %s1655 = scalar_lea.sflag [#allocation10], 1
    %1656 = vsyncpa %s1655, 1
    %1657 = vsyncpa [#allocation8], 1
    %s1658 = scalar_lea.sflag [#allocation8], 1
    %1659 = vsyncpa %s1658, 1

</llo_original>
